<compile_context>
chip_gen: v7x
topology: tpu7x:2x2x1
jax: 0.10.0
libtpu: 0.0.40
codegen_flags: <defaults>
</compile_context>

<pallas_src>
import functools

import jax
import jax.numpy as jnp
from jax import lax
from jax.experimental import pallas as pl
from jax.experimental.pallas import tpu as pltpu


def _round_up(x, m):
    return (x + m - 1) // m * m


# ------------------------------ fused kernel -------------------------------
def _fused_kernel(x_ref, ewih_ref, ewhh_ref, eb_ref,
                  dwhh0_ref, db0_ref, dwhhf_ref, dbf_ref,
                  wfc_ref, bfc_ref, out_ref, *, T, L, B, Hp):
    """All refs are full-array VMEM blocks (no grid).

    x_ref    : (T*B, I)   time-major, batch-padded encoder input (f32)
    ewih     : (I, 4*Hp)  encoder input weights, gate order (i,f,o,g) (f32)
    ewhh     : (Hp, 4*Hp) encoder recurrent weights (bf16)
    eb       : (1, 4*Hp)  encoder fused bias (f32)
    dwhh0    : (Hp, 4*Hp) decoder recurrent weights, unfolded (bf16, step 0)
    db0      : (1, 4*Hp)  decoder fused bias, unfolded (f32, step 0)
    dwhhf    : (Hp, 4*Hp) decoder recurrent weights with fc head folded (bf16)
    dbf      : (1, 4*Hp)  decoder fused bias with fc head folded (f32)
    wfc      : (Hp, 1)    fc weight (f32),  bfc: (1, 1) fc bias (f32)
    out_ref  : (L*B, 1)   decoder predictions, row t*B + b = y_t[b]
    """
    f32 = jnp.float32
    bf16 = jnp.bfloat16

    # Hoisted input projection for ALL encoder steps: one MXU call (f32; it
    # runs once, off the serial critical path).
    gx = jnp.dot(x_ref[...], ewih_ref[...],
                 preferred_element_type=f32) + eb_ref[...]          # (T*B, 4Hp)

    def cell(gates, c):
        # gate order (i, f, o, g); each gate is a lane-aligned 128-wide block.
        # sigmoid via a single EUP tanh: sigmoid(x) = 0.5*tanh(0.5*x) + 0.5
        s = 0.5 * jnp.tanh(0.5 * gates[:, : 3 * Hp]) + 0.5
        i = s[:, 0 * Hp:1 * Hp]
        f = s[:, 1 * Hp:2 * Hp]
        o = s[:, 2 * Hp:3 * Hp]
        g = jnp.tanh(gates[:, 3 * Hp:])
        c_new = f * c + i * g
        h_new = o * jnp.tanh(c_new)
        return h_new, c_new

    h = jnp.zeros((B, Hp), f32)
    c = jnp.zeros((B, Hp), f32)

    def enc_step(h, c, gx_t):
        # bf16 matmul operands, f32 accumulation; weight read from the VMEM
        # ref per use (no long-lived hoisted weight value).
        gates = gx_t + jnp.dot(h.astype(bf16), ewhh_ref[...],
                               preferred_element_type=f32)
        return cell(gates, c)

    # ---- encoder recurrence ----
    if T <= 16:
        for t in range(T):
            h, c = enc_step(h, c, gx[t * B:(t + 1) * B, :])
    else:
        def body(t, carry):
            hh, cc = carry
            gx_t = lax.dynamic_slice_in_dim(gx, t * B, B, axis=0)
            return enc_step(hh, cc, gx_t)
        h, c = lax.fori_loop(0, T, body, (h, c))

    # ---- autoregressive decoder (fc head folded into the recurrence) ----
    # step 0: decoder_input = zeros -> gates = h @ dwhh + db  (unfolded)
    gates = jnp.dot(h.astype(bf16), dwhh0_ref[...],
                    preferred_element_type=f32) + db0_ref[...]
    h, c = cell(gates, c)
    hs = [h]
    for _ in range(1, L):
        # y_{t-1} is never materialized: folded into dwhh' / db'.
        gates = jnp.dot(h.astype(bf16), dwhhf_ref[...],
                        preferred_element_type=f32) + dbf_ref[...]
        h, c = cell(gates, c)
        hs.append(h)

    # All outputs in ONE matmul (f32), single store at kernel end.
    hs_all = jnp.concatenate(hs, axis=0)                             # (L*B, Hp)
    ys = jnp.dot(hs_all, wfc_ref[...],
                 preferred_element_type=f32) + bfc_ref[...]          # (L*B, 1)
    out_ref[...] = ys


# --------------------------- param preprocessing ---------------------------
def _prep_lstm(w_ih, w_hh, b_ih, b_hh, Hp):
    """PyTorch layout (4H, in)/(4H, H), gate order (i, f, g, o)  ->
       kernel layout (in, 4*Hp)/(Hp, 4*Hp), gate order (i, f, o, g),
       each gate block zero-padded H -> Hp (lane-aligned); biases fused."""
    H = w_hh.shape[1]

    def cols(w):
        fan_in = w.shape[1]
        w4 = w.reshape(4, H, fan_in)
        w4 = jnp.stack([w4[0], w4[1], w4[3], w4[2]])        # (i, f, o, g)
        w4 = jnp.pad(w4, ((0, 0), (0, Hp - H), (0, 0)))     # (4, Hp, fan_in)
        return jnp.transpose(w4, (2, 0, 1)).reshape(fan_in, 4 * Hp)

    wih_t = cols(w_ih)                                       # (in, 4Hp)
    whh_t = jnp.pad(cols(w_hh), ((0, Hp - H), (0, 0)))       # (Hp, 4Hp)
    b4 = (b_ih + b_hh).reshape(4, H)
    b4 = jnp.stack([b4[0], b4[1], b4[3], b4[2]])
    b = jnp.pad(b4, ((0, 0), (0, Hp - H))).reshape(1, 4 * Hp)
    return wih_t, whh_t, b


# ------------------------------ full forward -------------------------------
@functools.partial(jax.jit, static_argnames=("lookahead",))
def encoder_decoder_forward(x, params, lookahead):
    """x: (B, T, I) batch-first like the PyTorch module. Returns (B, lookahead, 1)."""
    B, T, I = x.shape
    H = params["enc_w_hh"].shape[1]
    Hp = _round_up(H, 128)       # lane-align each gate block
    Bp = _round_up(B, 8)         # sublane-align the batch
    L = lookahead

    ewih, ewhh, eb = _prep_lstm(params["enc_w_ih"], params["enc_w_hh"],
                                params["enc_b_ih"], params["enc_b_hh"], Hp)
    dwih, dwhh, db = _prep_lstm(params["dec_w_ih"], params["dec_w_hh"],
                                params["dec_b_ih"], params["dec_b_hh"], Hp)
    wfc = jnp.pad(params["fc_w"].T, ((0, Hp - H), (0, 0)))   # (Hp, 1)
    bfc = params["fc_b"].reshape(1, 1)

    # Fold the fc head into the decoder recurrent weights (exact algebra):
    #   gates_t = y_{t-1} * dwih + h_{t-1} @ dwhh + db
    #           = h_{t-1} @ (dwhh + wfc @ dwih) + (db + bfc * dwih)
    dwhh_f = dwhh + wfc @ dwih                               # (Hp, 4Hp)
    db_f = db + bfc * dwih                                   # (1, 4Hp)

    # bf16 operands for the per-step recurrent matmuls (f32 accumulation).
    ewhh_bf = ewhh.astype(jnp.bfloat16)
    dwhh_bf = dwhh.astype(jnp.bfloat16)
    dwhh_f_bf = dwhh_f.astype(jnp.bfloat16)

    # time-major, pad batch, flatten to (T*Bp, I) so the x @ W_ih projection is
    # a single matmul inside the kernel (layout plumbing only).
    x_tm = jnp.transpose(x, (1, 0, 2)).astype(jnp.float32)   # (T, B, I)
    x_tm = jnp.pad(x_tm, ((0, 0), (0, Bp - B), (0, 0)))      # (T, Bp, I)
    x2d = x_tm.reshape(T * Bp, I)

    inputs = (x2d, ewih, ewhh_bf, eb, dwhh_bf, db, dwhh_f_bf, db_f, wfc, bfc)

    # Explicit VMEM budget sized from the actual buffers (+ intermediates).
    def nbytes(a):
        return a.size * a.dtype.itemsize
    gx_bytes = (T * Bp) * (4 * Hp) * 4
    out_bytes = L * Bp * 4
    vmem_limit = int(2 * (sum(nbytes(a) for a in inputs) + gx_bytes + out_bytes)
                     + (8 << 20))

    vmem_spec = pl.BlockSpec(memory_space=pltpu.MemorySpace.VMEM)
    kernel = functools.partial(_fused_kernel, T=T, L=L, B=Bp, Hp=Hp)
    out = pl.pallas_call(
        kernel,
        out_shape=jax.ShapeDtypeStruct((L * Bp, 1), jnp.float32),
        in_specs=[vmem_spec] * len(inputs),
        out_specs=vmem_spec,
        compiler_params=pltpu.CompilerParams(vmem_limit_bytes=vmem_limit),
    )(*inputs)

    out = out.reshape(L, Bp, 1)[:, :B, :]                    # (L, B, 1)
    return jnp.transpose(out, (1, 0, 2))                     # (B, L, 1)


# ---------------------------- pure-JAX reference ---------------------------
def _lstm_cell_ref(x_t, h, c, w_ih, w_hh, b_ih, b_hh):
    gates = x_t @ w_ih.T + h @ w_hh.T + b_ih + b_hh          # PyTorch layout
    H = h.shape[1]
    i = jax.nn.sigmoid(gates[:, 0 * H:1 * H])
    f = jax.nn.sigmoid(gates[:, 1 * H:2 * H])
    g = jnp.tanh(gates[:, 2 * H:3 * H])
    o = jax.nn.sigmoid(gates[:, 3 * H:4 * H])
    c_new = f * c + i * g
    h_new = o * jnp.tanh(c_new)
    return h_new, c_new


def reference_forward(x, params, lookahead):
    B, T, _ = x.shape
    H = params["enc_w_hh"].shape[1]
    h = jnp.zeros((B, H), jnp.float32)
    c = jnp.zeros((B, H), jnp.float32)
    for t in range(T):
        h, c = _lstm_cell_ref(x[:, t, :], h, c,
                              params["enc_w_ih"], params["enc_w_hh"],
                              params["enc_b_ih"], params["enc_b_hh"])
    y = jnp.zeros((B, 1), jnp.float32)
    outs = []
    for _ in range(lookahead):
        h, c = _lstm_cell_ref(y, h, c,
                              params["dec_w_ih"], params["dec_w_hh"],
                              params["dec_b_ih"], params["dec_b_hh"])
        y = h @ params["fc_w"].T + params["fc_b"]
        outs.append(y[:, None, :])
    return jnp.concatenate(outs, axis=1)


# ------------------------------- param init --------------------------------
def init_params(key, input_size, hidden_size):
    """Parameters stored in PyTorch nn.LSTM / nn.Linear layout, gate order (i,f,g,o)."""
    H = hidden_size
    scale = 1.0 / jnp.sqrt(jnp.float32(H))
    ks = jax.random.split(key, 10)

    def u(k, shape):
        return jax.random.uniform(k, shape, jnp.float32, -scale, scale)

    return {
        "enc_w_ih": u(ks[0], (4 * H, input_size)),
        "enc_w_hh": u(ks[1], (4 * H, H)),
        "enc_b_ih": u(ks[2], (4 * H,)),
        "enc_b_hh": u(ks[3], (4 * H,)),
        "dec_w_ih": u(ks[4], (4 * H, 1)),
        "dec_w_hh": u(ks[5], (4 * H, H)),
        "dec_b_ih": u(ks[6], (4 * H,)),
        "dec_b_hh": u(ks[7], (4 * H,)),
        "fc_w": u(ks[8], (1, H)),
        "fc_b": u(ks[9], (1,)),
    }


if __name__ == "__main__":
    B, T, I, H, LOOKAHEAD = 2, 8, 8, 32, 4

    key = jax.random.PRNGKey(0)
    k_x, k_p = jax.random.split(key)
    x = jax.random.normal(k_x, (B, T, I), jnp.float32)
    params = init_params(k_p, I, H)

    out = jax.block_until_ready(encoder_decoder_forward(x, params, LOOKAHEAD))
    ref = reference_forward(x, params, LOOKAHEAD)

    assert out.shape == (B, LOOKAHEAD, 1), out.shape
    # bf16 recurrent-matmul operands (f32 accumulation & state) -> relaxed tol.
    assert jnp.allclose(out, ref, atol=5e-2, rtol=5e-2), (out, ref)

    print("KERNEL_OK")
</pallas_src>

<mosaic_0001>
module attributes {stable_mosaic.version = 11 : i64} {
  func.func @_fused_kernel(%arg0: memref<64x8xf32, #tpu.memory_space<vmem>>, %arg1: memref<8x512xf32, #tpu.memory_space<vmem>>, %arg2: memref<128x512xbf16, #tpu.memory_space<vmem>>, %arg3: memref<1x512xf32, #tpu.memory_space<vmem>>, %arg4: memref<128x512xbf16, #tpu.memory_space<vmem>>, %arg5: memref<1x512xf32, #tpu.memory_space<vmem>>, %arg6: memref<128x512xbf16, #tpu.memory_space<vmem>>, %arg7: memref<1x512xf32, #tpu.memory_space<vmem>>, %arg8: memref<128x1xf32, #tpu.memory_space<vmem>>, %arg9: memref<1x1xf32, #tpu.memory_space<vmem>>, %arg10: memref<32x1xf32, #tpu.memory_space<vmem>>) attributes {dimension_semantics = [], scalar_prefetch = 0 : i64, scratch_operands = 0 : i64, tpu.core_type = #tpu.core_type<tc>} {
    %c0 = arith.constant 0 : index
    %c0_0 = arith.constant 0 : index
    %0 = vector.load %arg0[%c0, %c0_0] : memref<64x8xf32, #tpu.memory_space<vmem>>, vector<64x8xf32>
    %c0_1 = arith.constant 0 : index
    %c0_2 = arith.constant 0 : index
    %1 = vector.load %arg1[%c0_1, %c0_2] : memref<8x512xf32, #tpu.memory_space<vmem>>, vector<8x512xf32>
    %cst = arith.constant dense<0.000000e+00> : vector<64x512xf32>
    %2 = tpu.matmul %0, %1, %cst {dimension_numbers = #tpu.dot_dimension_numbers<[1], [0], [0], [1], [0, 0, 1, 1], [], []>} : vector<64x8xf32>, vector<8x512xf32>, vector<64x512xf32> -> vector<64x512xf32>
    %c0_3 = arith.constant 0 : index
    %c0_4 = arith.constant 0 : index
    %3 = vector.load %arg3[%c0_3, %c0_4] : memref<1x512xf32, #tpu.memory_space<vmem>>, vector<1x512xf32>
    %4 = vector.broadcast %3 : vector<1x512xf32> to vector<64x512xf32>
    %5 = arith.addf %2, %4 : vector<64x512xf32>
    %cst_5 = arith.constant 0.000000e+00 : f32
    %6 = vector.broadcast %cst_5 : f32 to vector<8x128xf32>
    %cst_6 = arith.constant 0.000000e+00 : f32
    %7 = vector.broadcast %cst_6 : f32 to vector<8x128xf32>
    %8 = vector.extract_strided_slice %5 {offsets = [0, 0], sizes = [8, 512], strides = [1, 1]} : vector<64x512xf32> to vector<8x512xf32>
    %9 = arith.truncf %6 : vector<8x128xf32> to vector<8x128xbf16>
    %c0_7 = arith.constant 0 : index
    %c0_8 = arith.constant 0 : index
    %10 = vector.load %arg2[%c0_7, %c0_8] : memref<128x512xbf16, #tpu.memory_space<vmem>>, vector<128x512xbf16>
    %cst_9 = arith.constant dense<0.000000e+00> : vector<8x512xf32>
    %11 = tpu.matmul %9, %10, %cst_9 {dimension_numbers = #tpu.dot_dimension_numbers<[1], [0], [0], [1], [0, 0, 1, 1], [], []>} : vector<8x128xbf16>, vector<128x512xbf16>, vector<8x512xf32> -> vector<8x512xf32>
    %12 = arith.addf %8, %11 : vector<8x512xf32>
    %13 = vector.extract_strided_slice %12 {offsets = [0, 0], sizes = [8, 384], strides = [1, 1]} : vector<8x512xf32> to vector<8x384xf32>
    %cst_10 = arith.constant 5.000000e-01 : f32
    %14 = vector.broadcast %cst_10 : f32 to vector<8x384xf32>
    %15 = arith.mulf %14, %13 : vector<8x384xf32>
    %16 = math.tanh %15 : vector<8x384xf32>
    %cst_11 = arith.constant 5.000000e-01 : f32
    %17 = vector.broadcast %cst_11 : f32 to vector<8x384xf32>
    %18 = arith.mulf %17, %16 : vector<8x384xf32>
    %cst_12 = arith.constant 5.000000e-01 : f32
    %19 = vector.broadcast %cst_12 : f32 to vector<8x384xf32>
    %20 = arith.addf %18, %19 : vector<8x384xf32>
    %21 = vector.extract_strided_slice %20 {offsets = [0, 0], sizes = [8, 128], strides = [1, 1]} : vector<8x384xf32> to vector<8x128xf32>
    %22 = vector.extract_strided_slice %20 {offsets = [0, 128], sizes = [8, 128], strides = [1, 1]} : vector<8x384xf32> to vector<8x128xf32>
    %23 = vector.extract_strided_slice %20 {offsets = [0, 256], sizes = [8, 128], strides = [1, 1]} : vector<8x384xf32> to vector<8x128xf32>
    %24 = vector.extract_strided_slice %12 {offsets = [0, 384], sizes = [8, 128], strides = [1, 1]} : vector<8x512xf32> to vector<8x128xf32>
    %25 = math.tanh %24 : vector<8x128xf32>
    %26 = arith.mulf %22, %7 : vector<8x128xf32>
    %27 = arith.mulf %21, %25 : vector<8x128xf32>
    %28 = arith.addf %26, %27 : vector<8x128xf32>
    %29 = math.tanh %28 : vector<8x128xf32>
    %30 = arith.mulf %23, %29 : vector<8x128xf32>
    %31 = vector.extract_strided_slice %5 {offsets = [8, 0], sizes = [8, 512], strides = [1, 1]} : vector<64x512xf32> to vector<8x512xf32>
    %32 = arith.truncf %30 : vector<8x128xf32> to vector<8x128xbf16>
    %c0_13 = arith.constant 0 : index
    %c0_14 = arith.constant 0 : index
    %33 = vector.load %arg2[%c0_13, %c0_14] : memref<128x512xbf16, #tpu.memory_space<vmem>>, vector<128x512xbf16>
    %cst_15 = arith.constant dense<0.000000e+00> : vector<8x512xf32>
    %34 = tpu.matmul %32, %33, %cst_15 {dimension_numbers = #tpu.dot_dimension_numbers<[1], [0], [0], [1], [0, 0, 1, 1], [], []>} : vector<8x128xbf16>, vector<128x512xbf16>, vector<8x512xf32> -> vector<8x512xf32>
    %35 = arith.addf %31, %34 : vector<8x512xf32>
    %36 = vector.extract_strided_slice %35 {offsets = [0, 0], sizes = [8, 384], strides = [1, 1]} : vector<8x512xf32> to vector<8x384xf32>
    %cst_16 = arith.constant 5.000000e-01 : f32
    %37 = vector.broadcast %cst_16 : f32 to vector<8x384xf32>
    %38 = arith.mulf %37, %36 : vector<8x384xf32>
    %39 = math.tanh %38 : vector<8x384xf32>
    %cst_17 = arith.constant 5.000000e-01 : f32
    %40 = vector.broadcast %cst_17 : f32 to vector<8x384xf32>
    %41 = arith.mulf %40, %39 : vector<8x384xf32>
    %cst_18 = arith.constant 5.000000e-01 : f32
    %42 = vector.broadcast %cst_18 : f32 to vector<8x384xf32>
    %43 = arith.addf %41, %42 : vector<8x384xf32>
    %44 = vector.extract_strided_slice %43 {offsets = [0, 0], sizes = [8, 128], strides = [1, 1]} : vector<8x384xf32> to vector<8x128xf32>
    %45 = vector.extract_strided_slice %43 {offsets = [0, 128], sizes = [8, 128], strides = [1, 1]} : vector<8x384xf32> to vector<8x128xf32>
    %46 = vector.extract_strided_slice %43 {offsets = [0, 256], sizes = [8, 128], strides = [1, 1]} : vector<8x384xf32> to vector<8x128xf32>
    %47 = vector.extract_strided_slice %35 {offsets = [0, 384], sizes = [8, 128], strides = [1, 1]} : vector<8x512xf32> to vector<8x128xf32>
    %48 = math.tanh %47 : vector<8x128xf32>
    %49 = arith.mulf %45, %28 : vector<8x128xf32>
    %50 = arith.mulf %44, %48 : vector<8x128xf32>
    %51 = arith.addf %49, %50 : vector<8x128xf32>
    %52 = math.tanh %51 : vector<8x128xf32>
    %53 = arith.mulf %46, %52 : vector<8x128xf32>
    %54 = vector.extract_strided_slice %5 {offsets = [16, 0], sizes = [8, 512], strides = [1, 1]} : vector<64x512xf32> to vector<8x512xf32>
    %55 = arith.truncf %53 : vector<8x128xf32> to vector<8x128xbf16>
    %c0_19 = arith.constant 0 : index
    %c0_20 = arith.constant 0 : index
    %56 = vector.load %arg2[%c0_19, %c0_20] : memref<128x512xbf16, #tpu.memory_space<vmem>>, vector<128x512xbf16>
    %cst_21 = arith.constant dense<0.000000e+00> : vector<8x512xf32>
    %57 = tpu.matmul %55, %56, %cst_21 {dimension_numbers = #tpu.dot_dimension_numbers<[1], [0], [0], [1], [0, 0, 1, 1], [], []>} : vector<8x128xbf16>, vector<128x512xbf16>, vector<8x512xf32> -> vector<8x512xf32>
    %58 = arith.addf %54, %57 : vector<8x512xf32>
    %59 = vector.extract_strided_slice %58 {offsets = [0, 0], sizes = [8, 384], strides = [1, 1]} : vector<8x512xf32> to vector<8x384xf32>
    %cst_22 = arith.constant 5.000000e-01 : f32
    %60 = vector.broadcast %cst_22 : f32 to vector<8x384xf32>
    %61 = arith.mulf %60, %59 : vector<8x384xf32>
    %62 = math.tanh %61 : vector<8x384xf32>
    %cst_23 = arith.constant 5.000000e-01 : f32
    %63 = vector.broadcast %cst_23 : f32 to vector<8x384xf32>
    %64 = arith.mulf %63, %62 : vector<8x384xf32>
    %cst_24 = arith.constant 5.000000e-01 : f32
    %65 = vector.broadcast %cst_24 : f32 to vector<8x384xf32>
    %66 = arith.addf %64, %65 : vector<8x384xf32>
    %67 = vector.extract_strided_slice %66 {offsets = [0, 0], sizes = [8, 128], strides = [1, 1]} : vector<8x384xf32> to vector<8x128xf32>
    %68 = vector.extract_strided_slice %66 {offsets = [0, 128], sizes = [8, 128], strides = [1, 1]} : vector<8x384xf32> to vector<8x128xf32>
    %69 = vector.extract_strided_slice %66 {offsets = [0, 256], sizes = [8, 128], strides = [1, 1]} : vector<8x384xf32> to vector<8x128xf32>
    %70 = vector.extract_strided_slice %58 {offsets = [0, 384], sizes = [8, 128], strides = [1, 1]} : vector<8x512xf32> to vector<8x128xf32>
    %71 = math.tanh %70 : vector<8x128xf32>
    %72 = arith.mulf %68, %51 : vector<8x128xf32>
    %73 = arith.mulf %67, %71 : vector<8x128xf32>
    %74 = arith.addf %72, %73 : vector<8x128xf32>
    %75 = math.tanh %74 : vector<8x128xf32>
    %76 = arith.mulf %69, %75 : vector<8x128xf32>
    %77 = vector.extract_strided_slice %5 {offsets = [24, 0], sizes = [8, 512], strides = [1, 1]} : vector<64x512xf32> to vector<8x512xf32>
    %78 = arith.truncf %76 : vector<8x128xf32> to vector<8x128xbf16>
    %c0_25 = arith.constant 0 : index
    %c0_26 = arith.constant 0 : index
    %79 = vector.load %arg2[%c0_25, %c0_26] : memref<128x512xbf16, #tpu.memory_space<vmem>>, vector<128x512xbf16>
    %cst_27 = arith.constant dense<0.000000e+00> : vector<8x512xf32>
    %80 = tpu.matmul %78, %79, %cst_27 {dimension_numbers = #tpu.dot_dimension_numbers<[1], [0], [0], [1], [0, 0, 1, 1], [], []>} : vector<8x128xbf16>, vector<128x512xbf16>, vector<8x512xf32> -> vector<8x512xf32>
    %81 = arith.addf %77, %80 : vector<8x512xf32>
    %82 = vector.extract_strided_slice %81 {offsets = [0, 0], sizes = [8, 384], strides = [1, 1]} : vector<8x512xf32> to vector<8x384xf32>
    %cst_28 = arith.constant 5.000000e-01 : f32
    %83 = vector.broadcast %cst_28 : f32 to vector<8x384xf32>
    %84 = arith.mulf %83, %82 : vector<8x384xf32>
    %85 = math.tanh %84 : vector<8x384xf32>
    %cst_29 = arith.constant 5.000000e-01 : f32
    %86 = vector.broadcast %cst_29 : f32 to vector<8x384xf32>
    %87 = arith.mulf %86, %85 : vector<8x384xf32>
    %cst_30 = arith.constant 5.000000e-01 : f32
    %88 = vector.broadcast %cst_30 : f32 to vector<8x384xf32>
    %89 = arith.addf %87, %88 : vector<8x384xf32>
    %90 = vector.extract_strided_slice %89 {offsets = [0, 0], sizes = [8, 128], strides = [1, 1]} : vector<8x384xf32> to vector<8x128xf32>
    %91 = vector.extract_strided_slice %89 {offsets = [0, 128], sizes = [8, 128], strides = [1, 1]} : vector<8x384xf32> to vector<8x128xf32>
    %92 = vector.extract_strided_slice %89 {offsets = [0, 256], sizes = [8, 128], strides = [1, 1]} : vector<8x384xf32> to vector<8x128xf32>
    %93 = vector.extract_strided_slice %81 {offsets = [0, 384], sizes = [8, 128], strides = [1, 1]} : vector<8x512xf32> to vector<8x128xf32>
    %94 = math.tanh %93 : vector<8x128xf32>
    %95 = arith.mulf %91, %74 : vector<8x128xf32>
    %96 = arith.mulf %90, %94 : vector<8x128xf32>
    %97 = arith.addf %95, %96 : vector<8x128xf32>
    %98 = math.tanh %97 : vector<8x128xf32>
    %99 = arith.mulf %92, %98 : vector<8x128xf32>
    %100 = vector.extract_strided_slice %5 {offsets = [32, 0], sizes = [8, 512], strides = [1, 1]} : vector<64x512xf32> to vector<8x512xf32>
    %101 = arith.truncf %99 : vector<8x128xf32> to vector<8x128xbf16>
    %c0_31 = arith.constant 0 : index
    %c0_32 = arith.constant 0 : index
    %102 = vector.load %arg2[%c0_31, %c0_32] : memref<128x512xbf16, #tpu.memory_space<vmem>>, vector<128x512xbf16>
    %cst_33 = arith.constant dense<0.000000e+00> : vector<8x512xf32>
    %103 = tpu.matmul %101, %102, %cst_33 {dimension_numbers = #tpu.dot_dimension_numbers<[1], [0], [0], [1], [0, 0, 1, 1], [], []>} : vector<8x128xbf16>, vector<128x512xbf16>, vector<8x512xf32> -> vector<8x512xf32>
    %104 = arith.addf %100, %103 : vector<8x512xf32>
    %105 = vector.extract_strided_slice %104 {offsets = [0, 0], sizes = [8, 384], strides = [1, 1]} : vector<8x512xf32> to vector<8x384xf32>
    %cst_34 = arith.constant 5.000000e-01 : f32
    %106 = vector.broadcast %cst_34 : f32 to vector<8x384xf32>
    %107 = arith.mulf %106, %105 : vector<8x384xf32>
    %108 = math.tanh %107 : vector<8x384xf32>
    %cst_35 = arith.constant 5.000000e-01 : f32
    %109 = vector.broadcast %cst_35 : f32 to vector<8x384xf32>
    %110 = arith.mulf %109, %108 : vector<8x384xf32>
    %cst_36 = arith.constant 5.000000e-01 : f32
    %111 = vector.broadcast %cst_36 : f32 to vector<8x384xf32>
    %112 = arith.addf %110, %111 : vector<8x384xf32>
    %113 = vector.extract_strided_slice %112 {offsets = [0, 0], sizes = [8, 128], strides = [1, 1]} : vector<8x384xf32> to vector<8x128xf32>
    %114 = vector.extract_strided_slice %112 {offsets = [0, 128], sizes = [8, 128], strides = [1, 1]} : vector<8x384xf32> to vector<8x128xf32>
    %115 = vector.extract_strided_slice %112 {offsets = [0, 256], sizes = [8, 128], strides = [1, 1]} : vector<8x384xf32> to vector<8x128xf32>
    %116 = vector.extract_strided_slice %104 {offsets = [0, 384], sizes = [8, 128], strides = [1, 1]} : vector<8x512xf32> to vector<8x128xf32>
    %117 = math.tanh %116 : vector<8x128xf32>
    %118 = arith.mulf %114, %97 : vector<8x128xf32>
    %119 = arith.mulf %113, %117 : vector<8x128xf32>
    %120 = arith.addf %118, %119 : vector<8x128xf32>
    %121 = math.tanh %120 : vector<8x128xf32>
    %122 = arith.mulf %115, %121 : vector<8x128xf32>
    %123 = vector.extract_strided_slice %5 {offsets = [40, 0], sizes = [8, 512], strides = [1, 1]} : vector<64x512xf32> to vector<8x512xf32>
    %124 = arith.truncf %122 : vector<8x128xf32> to vector<8x128xbf16>
    %c0_37 = arith.constant 0 : index
    %c0_38 = arith.constant 0 : index
    %125 = vector.load %arg2[%c0_37, %c0_38] : memref<128x512xbf16, #tpu.memory_space<vmem>>, vector<128x512xbf16>
    %cst_39 = arith.constant dense<0.000000e+00> : vector<8x512xf32>
    %126 = tpu.matmul %124, %125, %cst_39 {dimension_numbers = #tpu.dot_dimension_numbers<[1], [0], [0], [1], [0, 0, 1, 1], [], []>} : vector<8x128xbf16>, vector<128x512xbf16>, vector<8x512xf32> -> vector<8x512xf32>
    %127 = arith.addf %123, %126 : vector<8x512xf32>
    %128 = vector.extract_strided_slice %127 {offsets = [0, 0], sizes = [8, 384], strides = [1, 1]} : vector<8x512xf32> to vector<8x384xf32>
    %cst_40 = arith.constant 5.000000e-01 : f32
    %129 = vector.broadcast %cst_40 : f32 to vector<8x384xf32>
    %130 = arith.mulf %129, %128 : vector<8x384xf32>
    %131 = math.tanh %130 : vector<8x384xf32>
    %cst_41 = arith.constant 5.000000e-01 : f32
    %132 = vector.broadcast %cst_41 : f32 to vector<8x384xf32>
    %133 = arith.mulf %132, %131 : vector<8x384xf32>
    %cst_42 = arith.constant 5.000000e-01 : f32
    %134 = vector.broadcast %cst_42 : f32 to vector<8x384xf32>
    %135 = arith.addf %133, %134 : vector<8x384xf32>
    %136 = vector.extract_strided_slice %135 {offsets = [0, 0], sizes = [8, 128], strides = [1, 1]} : vector<8x384xf32> to vector<8x128xf32>
    %137 = vector.extract_strided_slice %135 {offsets = [0, 128], sizes = [8, 128], strides = [1, 1]} : vector<8x384xf32> to vector<8x128xf32>
    %138 = vector.extract_strided_slice %135 {offsets = [0, 256], sizes = [8, 128], strides = [1, 1]} : vector<8x384xf32> to vector<8x128xf32>
    %139 = vector.extract_strided_slice %127 {offsets = [0, 384], sizes = [8, 128], strides = [1, 1]} : vector<8x512xf32> to vector<8x128xf32>
    %140 = math.tanh %139 : vector<8x128xf32>
    %141 = arith.mulf %137, %120 : vector<8x128xf32>
    %142 = arith.mulf %136, %140 : vector<8x128xf32>
    %143 = arith.addf %141, %142 : vector<8x128xf32>
    %144 = math.tanh %143 : vector<8x128xf32>
    %145 = arith.mulf %138, %144 : vector<8x128xf32>
    %146 = vector.extract_strided_slice %5 {offsets = [48, 0], sizes = [8, 512], strides = [1, 1]} : vector<64x512xf32> to vector<8x512xf32>
    %147 = arith.truncf %145 : vector<8x128xf32> to vector<8x128xbf16>
    %c0_43 = arith.constant 0 : index
    %c0_44 = arith.constant 0 : index
    %148 = vector.load %arg2[%c0_43, %c0_44] : memref<128x512xbf16, #tpu.memory_space<vmem>>, vector<128x512xbf16>
    %cst_45 = arith.constant dense<0.000000e+00> : vector<8x512xf32>
    %149 = tpu.matmul %147, %148, %cst_45 {dimension_numbers = #tpu.dot_dimension_numbers<[1], [0], [0], [1], [0, 0, 1, 1], [], []>} : vector<8x128xbf16>, vector<128x512xbf16>, vector<8x512xf32> -> vector<8x512xf32>
    %150 = arith.addf %146, %149 : vector<8x512xf32>
    %151 = vector.extract_strided_slice %150 {offsets = [0, 0], sizes = [8, 384], strides = [1, 1]} : vector<8x512xf32> to vector<8x384xf32>
    %cst_46 = arith.constant 5.000000e-01 : f32
    %152 = vector.broadcast %cst_46 : f32 to vector<8x384xf32>
    %153 = arith.mulf %152, %151 : vector<8x384xf32>
    %154 = math.tanh %153 : vector<8x384xf32>
    %cst_47 = arith.constant 5.000000e-01 : f32
    %155 = vector.broadcast %cst_47 : f32 to vector<8x384xf32>
    %156 = arith.mulf %155, %154 : vector<8x384xf32>
    %cst_48 = arith.constant 5.000000e-01 : f32
    %157 = vector.broadcast %cst_48 : f32 to vector<8x384xf32>
    %158 = arith.addf %156, %157 : vector<8x384xf32>
    %159 = vector.extract_strided_slice %158 {offsets = [0, 0], sizes = [8, 128], strides = [1, 1]} : vector<8x384xf32> to vector<8x128xf32>
    %160 = vector.extract_strided_slice %158 {offsets = [0, 128], sizes = [8, 128], strides = [1, 1]} : vector<8x384xf32> to vector<8x128xf32>
    %161 = vector.extract_strided_slice %158 {offsets = [0, 256], sizes = [8, 128], strides = [1, 1]} : vector<8x384xf32> to vector<8x128xf32>
    %162 = vector.extract_strided_slice %150 {offsets = [0, 384], sizes = [8, 128], strides = [1, 1]} : vector<8x512xf32> to vector<8x128xf32>
    %163 = math.tanh %162 : vector<8x128xf32>
    %164 = arith.mulf %160, %143 : vector<8x128xf32>
    %165 = arith.mulf %159, %163 : vector<8x128xf32>
    %166 = arith.addf %164, %165 : vector<8x128xf32>
    %167 = math.tanh %166 : vector<8x128xf32>
    %168 = arith.mulf %161, %167 : vector<8x128xf32>
    %169 = vector.extract_strided_slice %5 {offsets = [56, 0], sizes = [8, 512], strides = [1, 1]} : vector<64x512xf32> to vector<8x512xf32>
    %170 = arith.truncf %168 : vector<8x128xf32> to vector<8x128xbf16>
    %c0_49 = arith.constant 0 : index
    %c0_50 = arith.constant 0 : index
    %171 = vector.load %arg2[%c0_49, %c0_50] : memref<128x512xbf16, #tpu.memory_space<vmem>>, vector<128x512xbf16>
    %cst_51 = arith.constant dense<0.000000e+00> : vector<8x512xf32>
    %172 = tpu.matmul %170, %171, %cst_51 {dimension_numbers = #tpu.dot_dimension_numbers<[1], [0], [0], [1], [0, 0, 1, 1], [], []>} : vector<8x128xbf16>, vector<128x512xbf16>, vector<8x512xf32> -> vector<8x512xf32>
    %173 = arith.addf %169, %172 : vector<8x512xf32>
    %174 = vector.extract_strided_slice %173 {offsets = [0, 0], sizes = [8, 384], strides = [1, 1]} : vector<8x512xf32> to vector<8x384xf32>
    %cst_52 = arith.constant 5.000000e-01 : f32
    %175 = vector.broadcast %cst_52 : f32 to vector<8x384xf32>
    %176 = arith.mulf %175, %174 : vector<8x384xf32>
    %177 = math.tanh %176 : vector<8x384xf32>
    %cst_53 = arith.constant 5.000000e-01 : f32
    %178 = vector.broadcast %cst_53 : f32 to vector<8x384xf32>
    %179 = arith.mulf %178, %177 : vector<8x384xf32>
    %cst_54 = arith.constant 5.000000e-01 : f32
    %180 = vector.broadcast %cst_54 : f32 to vector<8x384xf32>
    %181 = arith.addf %179, %180 : vector<8x384xf32>
    %182 = vector.extract_strided_slice %181 {offsets = [0, 0], sizes = [8, 128], strides = [1, 1]} : vector<8x384xf32> to vector<8x128xf32>
    %183 = vector.extract_strided_slice %181 {offsets = [0, 128], sizes = [8, 128], strides = [1, 1]} : vector<8x384xf32> to vector<8x128xf32>
    %184 = vector.extract_strided_slice %181 {offsets = [0, 256], sizes = [8, 128], strides = [1, 1]} : vector<8x384xf32> to vector<8x128xf32>
    %185 = vector.extract_strided_slice %173 {offsets = [0, 384], sizes = [8, 128], strides = [1, 1]} : vector<8x512xf32> to vector<8x128xf32>
    %186 = math.tanh %185 : vector<8x128xf32>
    %187 = arith.mulf %183, %166 : vector<8x128xf32>
    %188 = arith.mulf %182, %186 : vector<8x128xf32>
    %189 = arith.addf %187, %188 : vector<8x128xf32>
    %190 = math.tanh %189 : vector<8x128xf32>
    %191 = arith.mulf %184, %190 : vector<8x128xf32>
    %192 = arith.truncf %191 : vector<8x128xf32> to vector<8x128xbf16>
    %c0_55 = arith.constant 0 : index
    %c0_56 = arith.constant 0 : index
    %193 = vector.load %arg4[%c0_55, %c0_56] : memref<128x512xbf16, #tpu.memory_space<vmem>>, vector<128x512xbf16>
    %cst_57 = arith.constant dense<0.000000e+00> : vector<8x512xf32>
    %194 = tpu.matmul %192, %193, %cst_57 {dimension_numbers = #tpu.dot_dimension_numbers<[1], [0], [0], [1], [0, 0, 1, 1], [], []>} : vector<8x128xbf16>, vector<128x512xbf16>, vector<8x512xf32> -> vector<8x512xf32>
    %c0_58 = arith.constant 0 : index
    %c0_59 = arith.constant 0 : index
    %195 = vector.load %arg5[%c0_58, %c0_59] : memref<1x512xf32, #tpu.memory_space<vmem>>, vector<1x512xf32>
    %196 = vector.broadcast %195 : vector<1x512xf32> to vector<8x512xf32>
    %197 = arith.addf %194, %196 : vector<8x512xf32>
    %198 = vector.extract_strided_slice %197 {offsets = [0, 0], sizes = [8, 384], strides = [1, 1]} : vector<8x512xf32> to vector<8x384xf32>
    %cst_60 = arith.constant 5.000000e-01 : f32
    %199 = vector.broadcast %cst_60 : f32 to vector<8x384xf32>
    %200 = arith.mulf %199, %198 : vector<8x384xf32>
    %201 = math.tanh %200 : vector<8x384xf32>
    %cst_61 = arith.constant 5.000000e-01 : f32
    %202 = vector.broadcast %cst_61 : f32 to vector<8x384xf32>
    %203 = arith.mulf %202, %201 : vector<8x384xf32>
    %cst_62 = arith.constant 5.000000e-01 : f32
    %204 = vector.broadcast %cst_62 : f32 to vector<8x384xf32>
    %205 = arith.addf %203, %204 : vector<8x384xf32>
    %206 = vector.extract_strided_slice %205 {offsets = [0, 0], sizes = [8, 128], strides = [1, 1]} : vector<8x384xf32> to vector<8x128xf32>
    %207 = vector.extract_strided_slice %205 {offsets = [0, 128], sizes = [8, 128], strides = [1, 1]} : vector<8x384xf32> to vector<8x128xf32>
    %208 = vector.extract_strided_slice %205 {offsets = [0, 256], sizes = [8, 128], strides = [1, 1]} : vector<8x384xf32> to vector<8x128xf32>
    %209 = vector.extract_strided_slice %197 {offsets = [0, 384], sizes = [8, 128], strides = [1, 1]} : vector<8x512xf32> to vector<8x128xf32>
    %210 = math.tanh %209 : vector<8x128xf32>
    %211 = arith.mulf %207, %189 : vector<8x128xf32>
    %212 = arith.mulf %206, %210 : vector<8x128xf32>
    %213 = arith.addf %211, %212 : vector<8x128xf32>
    %214 = math.tanh %213 : vector<8x128xf32>
    %215 = arith.mulf %208, %214 : vector<8x128xf32>
    %216 = arith.truncf %215 : vector<8x128xf32> to vector<8x128xbf16>
    %c0_63 = arith.constant 0 : index
    %c0_64 = arith.constant 0 : index
    %217 = vector.load %arg6[%c0_63, %c0_64] : memref<128x512xbf16, #tpu.memory_space<vmem>>, vector<128x512xbf16>
    %cst_65 = arith.constant dense<0.000000e+00> : vector<8x512xf32>
    %218 = tpu.matmul %216, %217, %cst_65 {dimension_numbers = #tpu.dot_dimension_numbers<[1], [0], [0], [1], [0, 0, 1, 1], [], []>} : vector<8x128xbf16>, vector<128x512xbf16>, vector<8x512xf32> -> vector<8x512xf32>
    %c0_66 = arith.constant 0 : index
    %c0_67 = arith.constant 0 : index
    %219 = vector.load %arg7[%c0_66, %c0_67] : memref<1x512xf32, #tpu.memory_space<vmem>>, vector<1x512xf32>
    %220 = vector.broadcast %219 : vector<1x512xf32> to vector<8x512xf32>
    %221 = arith.addf %218, %220 : vector<8x512xf32>
    %222 = vector.extract_strided_slice %221 {offsets = [0, 0], sizes = [8, 384], strides = [1, 1]} : vector<8x512xf32> to vector<8x384xf32>
    %cst_68 = arith.constant 5.000000e-01 : f32
    %223 = vector.broadcast %cst_68 : f32 to vector<8x384xf32>
    %224 = arith.mulf %223, %222 : vector<8x384xf32>
    %225 = math.tanh %224 : vector<8x384xf32>
    %cst_69 = arith.constant 5.000000e-01 : f32
    %226 = vector.broadcast %cst_69 : f32 to vector<8x384xf32>
    %227 = arith.mulf %226, %225 : vector<8x384xf32>
    %cst_70 = arith.constant 5.000000e-01 : f32
    %228 = vector.broadcast %cst_70 : f32 to vector<8x384xf32>
    %229 = arith.addf %227, %228 : vector<8x384xf32>
    %230 = vector.extract_strided_slice %229 {offsets = [0, 0], sizes = [8, 128], strides = [1, 1]} : vector<8x384xf32> to vector<8x128xf32>
    %231 = vector.extract_strided_slice %229 {offsets = [0, 128], sizes = [8, 128], strides = [1, 1]} : vector<8x384xf32> to vector<8x128xf32>
    %232 = vector.extract_strided_slice %229 {offsets = [0, 256], sizes = [8, 128], strides = [1, 1]} : vector<8x384xf32> to vector<8x128xf32>
    %233 = vector.extract_strided_slice %221 {offsets = [0, 384], sizes = [8, 128], strides = [1, 1]} : vector<8x512xf32> to vector<8x128xf32>
    %234 = math.tanh %233 : vector<8x128xf32>
    %235 = arith.mulf %231, %213 : vector<8x128xf32>
    %236 = arith.mulf %230, %234 : vector<8x128xf32>
    %237 = arith.addf %235, %236 : vector<8x128xf32>
    %238 = math.tanh %237 : vector<8x128xf32>
    %239 = arith.mulf %232, %238 : vector<8x128xf32>
    %240 = arith.truncf %239 : vector<8x128xf32> to vector<8x128xbf16>
    %c0_71 = arith.constant 0 : index
    %c0_72 = arith.constant 0 : index
    %241 = vector.load %arg6[%c0_71, %c0_72] : memref<128x512xbf16, #tpu.memory_space<vmem>>, vector<128x512xbf16>
    %cst_73 = arith.constant dense<0.000000e+00> : vector<8x512xf32>
    %242 = tpu.matmul %240, %241, %cst_73 {dimension_numbers = #tpu.dot_dimension_numbers<[1], [0], [0], [1], [0, 0, 1, 1], [], []>} : vector<8x128xbf16>, vector<128x512xbf16>, vector<8x512xf32> -> vector<8x512xf32>
    %c0_74 = arith.constant 0 : index
    %c0_75 = arith.constant 0 : index
    %243 = vector.load %arg7[%c0_74, %c0_75] : memref<1x512xf32, #tpu.memory_space<vmem>>, vector<1x512xf32>
    %244 = vector.broadcast %243 : vector<1x512xf32> to vector<8x512xf32>
    %245 = arith.addf %242, %244 : vector<8x512xf32>
    %246 = vector.extract_strided_slice %245 {offsets = [0, 0], sizes = [8, 384], strides = [1, 1]} : vector<8x512xf32> to vector<8x384xf32>
    %cst_76 = arith.constant 5.000000e-01 : f32
    %247 = vector.broadcast %cst_76 : f32 to vector<8x384xf32>
    %248 = arith.mulf %247, %246 : vector<8x384xf32>
    %249 = math.tanh %248 : vector<8x384xf32>
    %cst_77 = arith.constant 5.000000e-01 : f32
    %250 = vector.broadcast %cst_77 : f32 to vector<8x384xf32>
    %251 = arith.mulf %250, %249 : vector<8x384xf32>
    %cst_78 = arith.constant 5.000000e-01 : f32
    %252 = vector.broadcast %cst_78 : f32 to vector<8x384xf32>
    %253 = arith.addf %251, %252 : vector<8x384xf32>
    %254 = vector.extract_strided_slice %253 {offsets = [0, 0], sizes = [8, 128], strides = [1, 1]} : vector<8x384xf32> to vector<8x128xf32>
    %255 = vector.extract_strided_slice %253 {offsets = [0, 128], sizes = [8, 128], strides = [1, 1]} : vector<8x384xf32> to vector<8x128xf32>
    %256 = vector.extract_strided_slice %253 {offsets = [0, 256], sizes = [8, 128], strides = [1, 1]} : vector<8x384xf32> to vector<8x128xf32>
    %257 = vector.extract_strided_slice %245 {offsets = [0, 384], sizes = [8, 128], strides = [1, 1]} : vector<8x512xf32> to vector<8x128xf32>
    %258 = math.tanh %257 : vector<8x128xf32>
    %259 = arith.mulf %255, %237 : vector<8x128xf32>
    %260 = arith.mulf %254, %258 : vector<8x128xf32>
    %261 = arith.addf %259, %260 : vector<8x128xf32>
    %262 = math.tanh %261 : vector<8x128xf32>
    %263 = arith.mulf %256, %262 : vector<8x128xf32>
    %264 = arith.truncf %263 : vector<8x128xf32> to vector<8x128xbf16>
    %c0_79 = arith.constant 0 : index
    %c0_80 = arith.constant 0 : index
    %265 = vector.load %arg6[%c0_79, %c0_80] : memref<128x512xbf16, #tpu.memory_space<vmem>>, vector<128x512xbf16>
    %cst_81 = arith.constant dense<0.000000e+00> : vector<8x512xf32>
    %266 = tpu.matmul %264, %265, %cst_81 {dimension_numbers = #tpu.dot_dimension_numbers<[1], [0], [0], [1], [0, 0, 1, 1], [], []>} : vector<8x128xbf16>, vector<128x512xbf16>, vector<8x512xf32> -> vector<8x512xf32>
    %c0_82 = arith.constant 0 : index
    %c0_83 = arith.constant 0 : index
    %267 = vector.load %arg7[%c0_82, %c0_83] : memref<1x512xf32, #tpu.memory_space<vmem>>, vector<1x512xf32>
    %268 = vector.broadcast %267 : vector<1x512xf32> to vector<8x512xf32>
    %269 = arith.addf %266, %268 : vector<8x512xf32>
    %270 = vector.extract_strided_slice %269 {offsets = [0, 0], sizes = [8, 384], strides = [1, 1]} : vector<8x512xf32> to vector<8x384xf32>
    %cst_84 = arith.constant 5.000000e-01 : f32
    %271 = vector.broadcast %cst_84 : f32 to vector<8x384xf32>
    %272 = arith.mulf %271, %270 : vector<8x384xf32>
    %273 = math.tanh %272 : vector<8x384xf32>
    %cst_85 = arith.constant 5.000000e-01 : f32
    %274 = vector.broadcast %cst_85 : f32 to vector<8x384xf32>
    %275 = arith.mulf %274, %273 : vector<8x384xf32>
    %cst_86 = arith.constant 5.000000e-01 : f32
    %276 = vector.broadcast %cst_86 : f32 to vector<8x384xf32>
    %277 = arith.addf %275, %276 : vector<8x384xf32>
    %278 = vector.extract_strided_slice %277 {offsets = [0, 0], sizes = [8, 128], strides = [1, 1]} : vector<8x384xf32> to vector<8x128xf32>
    %279 = vector.extract_strided_slice %277 {offsets = [0, 128], sizes = [8, 128], strides = [1, 1]} : vector<8x384xf32> to vector<8x128xf32>
    %280 = vector.extract_strided_slice %277 {offsets = [0, 256], sizes = [8, 128], strides = [1, 1]} : vector<8x384xf32> to vector<8x128xf32>
    %281 = vector.extract_strided_slice %269 {offsets = [0, 384], sizes = [8, 128], strides = [1, 1]} : vector<8x512xf32> to vector<8x128xf32>
    %282 = math.tanh %281 : vector<8x128xf32>
    %283 = arith.mulf %279, %261 : vector<8x128xf32>
    %284 = arith.mulf %278, %282 : vector<8x128xf32>
    %285 = arith.addf %283, %284 : vector<8x128xf32>
    %286 = math.tanh %285 : vector<8x128xf32>
    %287 = arith.mulf %280, %286 : vector<8x128xf32>
    %288 = tpu.concatenate %215, %239, %263, %287 in 0 : vector<8x128xf32>, vector<8x128xf32>, vector<8x128xf32>, vector<8x128xf32> -> vector<32x128xf32>
    %c0_87 = arith.constant 0 : index
    %c0_88 = arith.constant 0 : index
    %289 = vector.load %arg8[%c0_87, %c0_88] : memref<128x1xf32, #tpu.memory_space<vmem>>, vector<128x1xf32>
    %cst_89 = arith.constant dense<0.000000e+00> : vector<32x1xf32>
    %290 = tpu.matmul %288, %289, %cst_89 {dimension_numbers = #tpu.dot_dimension_numbers<[1], [0], [0], [1], [0, 0, 1, 1], [], []>} : vector<32x128xf32>, vector<128x1xf32>, vector<32x1xf32> -> vector<32x1xf32>
    %c0_90 = arith.constant 0 : index
    %c0_91 = arith.constant 0 : index
    %291 = vector.load %arg9[%c0_90, %c0_91] : memref<1x1xf32, #tpu.memory_space<vmem>>, vector<1x1xf32>
    %292 = vector.broadcast %291 : vector<1x1xf32> to vector<32x1xf32>
    %293 = arith.addf %290, %292 : vector<32x1xf32>
    %c0_92 = arith.constant 0 : index
    %c0_93 = arith.constant 0 : index
    %294 = vector.load %arg10[%c0_92, %c0_93] : memref<32x1xf32, #tpu.memory_space<vmem>>, vector<32x1xf32>
    tpu.vector_store %arg10[%c0_92, %c0_93], %293 {strides = array<i32>} : memref<32x1xf32, #tpu.memory_space<vmem>>, vector<32x1xf32>,
    return
  }
}

</mosaic_0001>

<llo_original>
// kernel: encoder_decoder_forward.1
$region0: #{encoder_decoder_forward.1}
  #allocation0 [shape = 'u32[]', space=smem, size = 0x4, offset = 0x4, fixed_abs, tag = 'smem constant byte address 0x4 - core index']
  #allocation1 [shape = 'u32[144,128]{1,0:T(1,128)}', space=vmem, size = 0x12000, scoped, tag = 'internal scratch']
  #allocation2 [shape = 'f32[1,1]{1,0:T(1,128)S(1)}', space=vmem, size = 0x200, scoped, tag = 'scoped memory for encoder_decoder_forward.1']
  %s0 = inlined_call_operand.vmem [shape: f32[64,8], index: 0, kind: input, shape index: {}]
  %s1 = inlined_call_operand.vmem [shape: f32[8,512], index: 1, kind: input, shape index: {}]
  %s2 = inlined_call_operand.vmem [shape: bf16[128,512], index: 2, kind: input, shape index: {}]
  %s3 = inlined_call_operand.vmem [shape: f32[1,512], index: 3, kind: input, shape index: {}]
  %s4 = inlined_call_operand.vmem [shape: bf16[128,512], index: 4, kind: input, shape index: {}]
  %s5 = inlined_call_operand.vmem [shape: f32[1,512], index: 5, kind: input, shape index: {}]
  %s6 = inlined_call_operand.vmem [shape: bf16[128,512], index: 6, kind: input, shape index: {}]
  %s7 = inlined_call_operand.vmem [shape: f32[1,512], index: 7, kind: input, shape index: {}]
  %s8 = inlined_call_operand.vmem [shape: f32[128,1], index: 8, kind: input, shape index: {}]
  %s9 = inlined_call_operand.<no memory space> [shape: f32[1,1], index: 9, kind: input, shape index: {}]
  %s10 = inlined_call_operand.vmem [shape: f32[32,1], index: 10, kind: output, shape index: {}]
  %s11 = sld [smem:[#allocation0]]
  $region50: #{encoder_decoder_forward.1} parent=0
    _
  %s13 = ssub.s32 1, %s11
  %s14 = scalar_select 0, %s13, %s11
  %v15 = vstv %s9
  %16 = vst [vmem:[#allocation2] sm:$0x1] %v15
  // Predicated region
  $region2: #{encoder_decoder_forward.1} parent=0 // pred_check
    _
  $region3: #{encoder_decoder_forward.1} parent=0 // pred_check_branch
    %18 = sbr.rel (0) target = $region5
  $region4: #{encoder_decoder_forward.1} parent=0 // pred_region
    _
  $region5: #{encoder_decoder_forward.1} parent=0 // pred_fallthru
    _
  // Predicated region
  $region6: #{encoder_decoder_forward.1} parent=0 // pred_check
    _
  $region7: #{encoder_decoder_forward.1} parent=0 // pred_check_branch
    %20 = sbr.rel (0) target = $region9
  $region8: #{encoder_decoder_forward.1} parent=0 // pred_region
    _
  $region9: #{encoder_decoder_forward.1} parent=0 // pred_fallthru
    _
  // Predicated region
  $region10: #{encoder_decoder_forward.1} parent=0 // pred_check
    _
  $region11: #{encoder_decoder_forward.1} parent=0 // pred_check_branch
    %22 = sbr.rel (0) target = $region13
  $region12: #{encoder_decoder_forward.1} parent=0 // pred_region
    _
  $region13: #{encoder_decoder_forward.1} parent=0 // pred_fallthru
    _
  // Predicated region
  $region14: #{encoder_decoder_forward.1} parent=0 // pred_check
    _
  $region15: #{encoder_decoder_forward.1} parent=0 // pred_check_branch
    %24 = sbr.rel (0) target = $region17
  $region16: #{encoder_decoder_forward.1} parent=0 // pred_region
    _
  $region17: #{encoder_decoder_forward.1} parent=0 // pred_fallthru
    _
  // Predicated region
  $region18: #{encoder_decoder_forward.1} parent=0 // pred_check
    _
  $region19: #{encoder_decoder_forward.1} parent=0 // pred_check_branch
    %26 = sbr.rel (0) target = $region21
  $region20: #{encoder_decoder_forward.1} parent=0 // pred_region
    _
  $region21: #{encoder_decoder_forward.1} parent=0 // pred_fallthru
    _
  // Predicated region
  $region22: #{encoder_decoder_forward.1} parent=0 // pred_check
    _
  $region23: #{encoder_decoder_forward.1} parent=0 // pred_check_branch
    %28 = sbr.rel (0) target = $region25
  $region24: #{encoder_decoder_forward.1} parent=0 // pred_region
    _
  $region25: #{encoder_decoder_forward.1} parent=0 // pred_fallthru
    _
  // Predicated region
  $region26: #{encoder_decoder_forward.1} parent=0 // pred_check
    _
  $region27: #{encoder_decoder_forward.1} parent=0 // pred_check_branch
    %30 = sbr.rel (0) target = $region29
  $region28: #{encoder_decoder_forward.1} parent=0 // pred_region
    _
  $region29: #{encoder_decoder_forward.1} parent=0 // pred_fallthru
    _
  // Predicated region
  $region30: #{encoder_decoder_forward.1} parent=0 // pred_check
    _
  $region31: #{encoder_decoder_forward.1} parent=0 // pred_check_branch
    %32 = sbr.rel (0) target = $region33
  $region32: #{encoder_decoder_forward.1} parent=0 // pred_region
    _
  $region33: #{encoder_decoder_forward.1} parent=0 // pred_fallthru
    _
  // Predicated region
  $region34: #{encoder_decoder_forward.1} parent=0 // pred_check
    _
  $region35: #{encoder_decoder_forward.1} parent=0 // pred_check_branch
    %34 = sbr.rel (0) target = $region37
  $region36: #{encoder_decoder_forward.1} parent=0 // pred_region
    _
  $region37: #{encoder_decoder_forward.1} parent=0 // pred_fallthru
    _
  // Predicated region
  $region38: #{encoder_decoder_forward.1} parent=0 // pred_check
    _
  $region39: #{encoder_decoder_forward.1} parent=0 // pred_check_branch
    %36 = sbr.rel (0) target = $region41
  $region40: #{encoder_decoder_forward.1} parent=0 // pred_region
    _
  $region41: #{encoder_decoder_forward.1} parent=0 // pred_fallthru
    _
  %v38 = vld [vmem:[%s0] sm:$0xff]
  %v39 = vld [vmem:[%s0 + $0x8] sm:$0xff]
  %v40 = vld [vmem:[%s0 + $0x10] sm:$0xff]
  %v41 = vld [vmem:[%s0 + $0x18] sm:$0xff]
  %v42 = vld [vmem:[%s0 + $0x20] sm:$0xff]
  %v43 = vld [vmem:[%s0 + $0x28] sm:$0xff]
  %v44 = vld [vmem:[%s0 + $0x30] sm:$0xff]
  %v45 = vld [vmem:[%s0 + $0x38] sm:$0xff]
  %v46 = vld [vmem:[%s1] sm:$0xff]
  %v47 = vld [vmem:[%s1 + $0x8] sm:$0xff]
  %v48 = vld [vmem:[%s1 + $0x10] sm:$0xff]
  %v49 = vld [vmem:[%s1 + $0x18] sm:$0xff]
  %v50 = vld [vmem:[%s3] sm:$0xf]
  %v52 = vlaneseq
  %v53 = vshrl.u32 %v52, 7
  %v54 = vsub.s32 0, %v53
  %v55 = vrot.slane %v50, %v54
  %v56 = vlaneseq
  %v57 = vshrl.u32 %v56, 7
  %v58 = vsub.s32 1, %v57
  %v59 = vrot.slane %v50, %v58
  %v60 = vlaneseq
  %v61 = vshrl.u32 %v60, 7
  %v62 = vsub.s32 2, %v61
  %v63 = vrot.slane %v50, %v62
  %v64 = vlaneseq
  %v65 = vshrl.u32 %v64, 7
  %v66 = vsub.s32 3, %v65
  %v67 = vrot.slane %v50, %v66
  %vm72 = vcmask 64512
  %v74 = vsel %vm72, %v38, 0
  %v77 = vsel %vm72, %v39, 0
  %v80 = vsel %vm72, %v40, 0
  %v83 = vsel %vm72, %v41, 0
  %v86 = vsel %vm72, %v42, 0
  %v89 = vsel %vm72, %v43, 0
  %v92 = vsel %vm72, %v44, 0
  %v95 = vsel %vm72, %v45, 0
  %97 = vmatprep.subr.mxu0 %v47
  %98 = vmatpush1.msra.mxu0 %v46
  %99 = vmatprep.subr.mxu0 0.0
  %100 = vmatpush1.msra.mxu0 0.0
  %101 = vmatprep.subr.mxu0 0.0
  %102 = vmatpush1.msra.mxu0 0.0
  %103 = vmatprep.subr.mxu0 0.0
  %104 = vmatpush1.msra.mxu0 0.0
  %105 = vmatprep.subr.mxu0 0.0
  %106 = vmatpush1.msra.mxu0 0.0
  %107 = vmatprep.subr.mxu0 0.0
  %108 = vmatpush1.msra.mxu0 0.0
  %109 = vmatprep.subr.mxu0 0.0
  %110 = vmatpush1.msra.mxu0 0.0
  %111 = vmatprep.subr.mxu0 0.0
  %112 = vmatpush1.msra.mxu0 0.0
  %113 = vmatprep.subr.mxu0 0.0
  %114 = vmatpush1.msra.mxu0 0.0
  %115 = vmatprep.subr.mxu0 0.0
  %116 = vmatpush1.msra.mxu0 0.0
  %117 = vmatprep.subr.mxu0 0.0
  %118 = vmatpush1.msra.mxu0 0.0
  %119 = vmatprep.subr.mxu0 0.0
  %120 = vmatpush1.msra.mxu0 0.0
  %121 = vmatprep.subr.mxu0 0.0
  %122 = vmatpush1.msra.mxu0 0.0
  %123 = vmatprep.subr.mxu0 0.0
  %124 = vmatpush1.msra.mxu0 0.0
  %125 = vmatprep.subr.mxu0 0.0
  %126 = vmatpush1.msra.mxu0 0.0
  %127 = vmatprep.subr.mxu0 0.0
  %128 = vmatpush1.msra.mxu0 0.0
  %129 = vmatprep.subr.mxu0 0.0
  %130 = vmatpush1.msra.mxu0 0.0
  %131 = vmatprep.subr.mxu0 0.0
  %132 = vmatpush1.msra.mxu0 0.0
  %133 = vmatprep.subr.mxu0 0.0
  %134 = vmatpush1.msra.mxu0 0.0
  %135 = vmatprep.subr.mxu0 0.0
  %136 = vmatpush1.msra.mxu0 0.0
  %137 = vmatprep.subr.mxu0 0.0
  %138 = vmatpush1.msra.mxu0 0.0
  %139 = vmatprep.subr.mxu0 0.0
  %140 = vmatpush1.msra.mxu0 0.0
  %141 = vmatprep.subr.mxu0 0.0
  %142 = vmatpush1.msra.mxu0 0.0
  %143 = vmatprep.subr.mxu0 0.0
  %144 = vmatpush1.msra.mxu0 0.0
  %145 = vmatprep.subr.mxu0 0.0
  %146 = vmatpush1.msra.mxu0 0.0
  %147 = vmatprep.subr.mxu0 0.0
  %148 = vmatpush1.msra.mxu0 0.0
  %149 = vmatprep.subr.mxu0 0.0
  %150 = vmatpush1.msra.mxu0 0.0
  %151 = vmatprep.subr.mxu0 0.0
  %152 = vmatpush1.msra.mxu0 0.0
  %153 = vmatprep.subr.mxu0 0.0
  %154 = vmatpush1.msra.mxu0 0.0
  %155 = vmatprep.subr.mxu0 0.0
  %156 = vmatpush1.msra.mxu0 0.0
  %157 = vmatprep.subr.mxu0 0.0
  %158 = vmatpush1.msra.mxu0 0.0
  %159 = vmatprep.subr.mxu0 0.0
  %160 = vmatpush1.msra.mxu0 0.0
  %161 = vmatprep.mubr.f32.mxu0 0.0
  %162 = vmatmul.mubr.f32.gmra.mrb[0].mxu0 %v74
  %v163 = vpop.f32.mrb[0].mxu0
  %v164 = vadd.f32 %v55, %v163
  %v165 = vpop.f32.mrb[0].mxu0
  %v166 = vadd.f32 %v59, %v165
  %167 = vmatprep.mubr.f32.mxu0 0.0
  %168 = vmatmul.mubr.f32.gmra.mrb[0].mxu0 %v77
  %v169 = vpop.f32.mrb[0].mxu0
  %v170 = vadd.f32 %v55, %v169
  %v171 = vpop.f32.mrb[0].mxu0
  %v172 = vadd.f32 %v59, %v171
  %173 = vmatprep.mubr.f32.mxu0 0.0
  %174 = vmatmul.mubr.f32.gmra.mrb[0].mxu0 %v80
  %v175 = vpop.f32.mrb[0].mxu0
  %v176 = vadd.f32 %v55, %v175
  %v177 = vpop.f32.mrb[0].mxu0
  %v178 = vadd.f32 %v59, %v177
  %179 = vmatprep.mubr.f32.mxu0 0.0
  %180 = vmatmul.mubr.f32.gmra.mrb[0].mxu0 %v83
  %v181 = vpop.f32.mrb[0].mxu0
  %v182 = vadd.f32 %v55, %v181
  %v183 = vpop.f32.mrb[0].mxu0
  %v184 = vadd.f32 %v59, %v183
  %185 = vmatprep.mubr.f32.mxu0 0.0
  %186 = vmatmul.mubr.f32.gmra.mrb[0].mxu0 %v86
  %v187 = vpop.f32.mrb[0].mxu0
  %v188 = vadd.f32 %v55, %v187
  %v189 = vpop.f32.mrb[0].mxu0
  %v190 = vadd.f32 %v59, %v189
  %191 = vmatprep.mubr.f32.mxu0 0.0
  %192 = vmatmul.mubr.f32.gmra.mrb[0].mxu0 %v89
  %v193 = vpop.f32.mrb[0].mxu0
  %v194 = vadd.f32 %v55, %v193
  %v195 = vpop.f32.mrb[0].mxu0
  %v196 = vadd.f32 %v59, %v195
  %197 = vmatprep.mubr.f32.mxu0 0.0
  %198 = vmatmul.mubr.f32.gmra.mrb[0].mxu0 %v92
  %v199 = vpop.f32.mrb[0].mxu0
  %v200 = vadd.f32 %v55, %v199
  %v201 = vpop.f32.mrb[0].mxu0
  %v202 = vadd.f32 %v59, %v201
  %203 = vmatprep.mubr.f32.mxu0 0.0
  %204 = vmatmul.mubr.f32.gmra.mrb[0].mxu0 %v95
  %v205 = vpop.f32.mrb[0].mxu0
  %v206 = vadd.f32 %v55, %v205
  %v207 = vpop.f32.mrb[0].mxu0
  %v208 = vadd.f32 %v59, %v207
  %209 = vdwg.mxu0
  %210 = vmatprep.subr.mxu0 %v49
  %211 = vmatpush1.msra.mxu0 %v48
  %212 = vmatprep.subr.mxu0 0.0
  %213 = vmatpush1.msra.mxu0 0.0
  %214 = vmatprep.subr.mxu0 0.0
  %215 = vmatpush1.msra.mxu0 0.0
  %216 = vmatprep.subr.mxu0 0.0
  %217 = vmatpush1.msra.mxu0 0.0
  %218 = vmatprep.subr.mxu0 0.0
  %219 = vmatpush1.msra.mxu0 0.0
  %220 = vmatprep.subr.mxu0 0.0
  %221 = vmatpush1.msra.mxu0 0.0
  %222 = vmatprep.subr.mxu0 0.0
  %223 = vmatpush1.msra.mxu0 0.0
  %224 = vmatprep.subr.mxu0 0.0
  %225 = vmatpush1.msra.mxu0 0.0
  %226 = vmatprep.subr.mxu0 0.0
  %227 = vmatpush1.msra.mxu0 0.0
  %228 = vmatprep.subr.mxu0 0.0
  %229 = vmatpush1.msra.mxu0 0.0
  %230 = vmatprep.subr.mxu0 0.0
  %231 = vmatpush1.msra.mxu0 0.0
  %232 = vmatprep.subr.mxu0 0.0
  %233 = vmatpush1.msra.mxu0 0.0
  %234 = vmatprep.subr.mxu0 0.0
  %235 = vmatpush1.msra.mxu0 0.0
  %236 = vmatprep.subr.mxu0 0.0
  %237 = vmatpush1.msra.mxu0 0.0
  %238 = vmatprep.subr.mxu0 0.0
  %239 = vmatpush1.msra.mxu0 0.0
  %240 = vmatprep.subr.mxu0 0.0
  %241 = vmatpush1.msra.mxu0 0.0
  %242 = vmatprep.subr.mxu0 0.0
  %243 = vmatpush1.msra.mxu0 0.0
  %244 = vmatprep.subr.mxu0 0.0
  %245 = vmatpush1.msra.mxu0 0.0
  %246 = vmatprep.subr.mxu0 0.0
  %247 = vmatpush1.msra.mxu0 0.0
  %248 = vmatprep.subr.mxu0 0.0
  %249 = vmatpush1.msra.mxu0 0.0
  %250 = vmatprep.subr.mxu0 0.0
  %251 = vmatpush1.msra.mxu0 0.0
  %252 = vmatprep.subr.mxu0 0.0
  %253 = vmatpush1.msra.mxu0 0.0
  %254 = vmatprep.subr.mxu0 0.0
  %255 = vmatpush1.msra.mxu0 0.0
  %256 = vmatprep.subr.mxu0 0.0
  %257 = vmatpush1.msra.mxu0 0.0
  %258 = vmatprep.subr.mxu0 0.0
  %259 = vmatpush1.msra.mxu0 0.0
  %260 = vmatprep.subr.mxu0 0.0
  %261 = vmatpush1.msra.mxu0 0.0
  %262 = vmatprep.subr.mxu0 0.0
  %263 = vmatpush1.msra.mxu0 0.0
  %264 = vmatprep.subr.mxu0 0.0
  %265 = vmatpush1.msra.mxu0 0.0
  %266 = vmatprep.subr.mxu0 0.0
  %267 = vmatpush1.msra.mxu0 0.0
  %268 = vmatprep.subr.mxu0 0.0
  %269 = vmatpush1.msra.mxu0 0.0
  %270 = vmatprep.subr.mxu0 0.0
  %271 = vmatpush1.msra.mxu0 0.0
  %272 = vmatprep.subr.mxu0 0.0
  %273 = vmatpush1.msra.mxu0 0.0
  %274 = vmatprep.mubr.f32.mxu0 0.0
  %275 = vmatmul.mubr.f32.gmra.mrb[0].mxu0 %v74
  %v276 = vpop.f32.mrb[0].mxu0
  %v277 = vadd.f32 %v63, %v276
  %v278 = vpop.f32.mrb[0].mxu0
  %v279 = vadd.f32 %v67, %v278
  %280 = vmatprep.mubr.f32.mxu0 0.0
  %281 = vmatmul.mubr.f32.gmra.mrb[0].mxu0 %v77
  %v282 = vpop.f32.mrb[0].mxu0
  %v283 = vadd.f32 %v63, %v282
  %v284 = vpop.f32.mrb[0].mxu0
  %v285 = vadd.f32 %v67, %v284
  %286 = vmatprep.mubr.f32.mxu0 0.0
  %287 = vmatmul.mubr.f32.gmra.mrb[0].mxu0 %v80
  %v288 = vpop.f32.mrb[0].mxu0
  %v289 = vadd.f32 %v63, %v288
  %v290 = vpop.f32.mrb[0].mxu0
  %v291 = vadd.f32 %v67, %v290
  %292 = vmatprep.mubr.f32.mxu0 0.0
  %293 = vmatmul.mubr.f32.gmra.mrb[0].mxu0 %v83
  %v294 = vpop.f32.mrb[0].mxu0
  %v295 = vadd.f32 %v63, %v294
  %v296 = vpop.f32.mrb[0].mxu0
  %v297 = vadd.f32 %v67, %v296
  %298 = vmatprep.mubr.f32.mxu0 0.0
  %299 = vmatmul.mubr.f32.gmra.mrb[0].mxu0 %v86
  %v300 = vpop.f32.mrb[0].mxu0
  %v301 = vadd.f32 %v63, %v300
  %v302 = vpop.f32.mrb[0].mxu0
  %v303 = vadd.f32 %v67, %v302
  %304 = vmatprep.mubr.f32.mxu0 0.0
  %305 = vmatmul.mubr.f32.gmra.mrb[0].mxu0 %v89
  %v306 = vpop.f32.mrb[0].mxu0
  %v307 = vadd.f32 %v63, %v306
  %v308 = vpop.f32.mrb[0].mxu0
  %v309 = vadd.f32 %v67, %v308
  %310 = vmatprep.mubr.f32.mxu0 0.0
  %311 = vmatmul.mubr.f32.gmra.mrb[0].mxu0 %v92
  %v312 = vpop.f32.mrb[0].mxu0
  %v313 = vadd.f32 %v63, %v312
  %v314 = vpop.f32.mrb[0].mxu0
  %v315 = vadd.f32 %v67, %v314
  %316 = vmatprep.mubr.f32.mxu0 0.0
  %317 = vmatmul.mubr.f32.gmra.mrb[0].mxu0 %v95
  %v318 = vpop.f32.mrb[0].mxu0
  %v319 = vadd.f32 %v63, %v318
  %v320 = vpop.f32.mrb[0].mxu0
  %v321 = vadd.f32 %v67, %v320
  %322 = vdwg.mxu0
  %v323 = vld [vmem:[%s2] sm:$0xff]
  %v324 = vld [vmem:[%s2 + $0x8] sm:$0xff]
  %v325 = vld [vmem:[%s2 + $0x10] sm:$0xff]
  %v326 = vld [vmem:[%s2 + $0x18] sm:$0xff]
  %v327 = vld [vmem:[%s2 + $0x20] sm:$0xff]
  %v328 = vld [vmem:[%s2 + $0x28] sm:$0xff]
  %v329 = vld [vmem:[%s2 + $0x30] sm:$0xff]
  %v330 = vld [vmem:[%s2 + $0x38] sm:$0xff]
  %v331 = vld [vmem:[%s2 + $0x40] sm:$0xff]
  %v332 = vld [vmem:[%s2 + $0x48] sm:$0xff]
  %v333 = vld [vmem:[%s2 + $0x50] sm:$0xff]
  %v334 = vld [vmem:[%s2 + $0x58] sm:$0xff]
  %v335 = vld [vmem:[%s2 + $0x60] sm:$0xff]
  %v336 = vld [vmem:[%s2 + $0x68] sm:$0xff]
  %v337 = vld [vmem:[%s2 + $0x70] sm:$0xff]
  %v338 = vld [vmem:[%s2 + $0x78] sm:$0xff]
  %v339 = vld [vmem:[%s2 + $0x80] sm:$0xff]
  %v340 = vld [vmem:[%s2 + $0x88] sm:$0xff]
  %v341 = vld [vmem:[%s2 + $0x90] sm:$0xff]
  %v342 = vld [vmem:[%s2 + $0x98] sm:$0xff]
  %v343 = vld [vmem:[%s2 + $0xa0] sm:$0xff]
  %v344 = vld [vmem:[%s2 + $0xa8] sm:$0xff]
  %v345 = vld [vmem:[%s2 + $0xb0] sm:$0xff]
  %v346 = vld [vmem:[%s2 + $0xb8] sm:$0xff]
  %v347 = vld [vmem:[%s2 + $0xc0] sm:$0xff]
  %v348 = vld [vmem:[%s2 + $0xc8] sm:$0xff]
  %v349 = vld [vmem:[%s2 + $0xd0] sm:$0xff]
  %v350 = vld [vmem:[%s2 + $0xd8] sm:$0xff]
  %v351 = vld [vmem:[%s2 + $0xe0] sm:$0xff]
  %v352 = vld [vmem:[%s2 + $0xe8] sm:$0xff]
  %v353 = vld [vmem:[%s2 + $0xf0] sm:$0xff]
  %v354 = vld [vmem:[%s2 + $0xf8] sm:$0xff]
  %v387 = vunpack.c.l.b16 %v323
  %v388 = vunpack.c.h.b16 %v323
  %v389 = vunpack.c.l.b16 %v324
  %v390 = vunpack.c.h.b16 %v324
  %v391 = vunpack.c.l.b16 %v325
  %v392 = vunpack.c.h.b16 %v325
  %v393 = vunpack.c.l.b16 %v326
  %v394 = vunpack.c.h.b16 %v326
  %v395 = vunpack.c.l.b16 %v327
  %v396 = vunpack.c.h.b16 %v327
  %v397 = vunpack.c.l.b16 %v328
  %v398 = vunpack.c.h.b16 %v328
  %v399 = vunpack.c.l.b16 %v329
  %v400 = vunpack.c.h.b16 %v329
  %v401 = vunpack.c.l.b16 %v330
  %v402 = vunpack.c.h.b16 %v330
  %v403 = vunpack.c.l.b16 %v331
  %v404 = vunpack.c.h.b16 %v331
  %v405 = vunpack.c.l.b16 %v332
  %v406 = vunpack.c.h.b16 %v332
  %v407 = vunpack.c.l.b16 %v333
  %v408 = vunpack.c.h.b16 %v333
  %v409 = vunpack.c.l.b16 %v334
  %v410 = vunpack.c.h.b16 %v334
  %v411 = vunpack.c.l.b16 %v335
  %v412 = vunpack.c.h.b16 %v335
  %v413 = vunpack.c.l.b16 %v336
  %v414 = vunpack.c.h.b16 %v336
  %v415 = vunpack.c.l.b16 %v337
  %v416 = vunpack.c.h.b16 %v337
  %v417 = vunpack.c.l.b16 %v338
  %v418 = vunpack.c.h.b16 %v338
  %v419 = vunpack.c.l.b16 %v339
  %v420 = vunpack.c.h.b16 %v339
  %v421 = vunpack.c.l.b16 %v340
  %v422 = vunpack.c.h.b16 %v340
  %v423 = vunpack.c.l.b16 %v341
  %v424 = vunpack.c.h.b16 %v341
  %v425 = vunpack.c.l.b16 %v342
  %v426 = vunpack.c.h.b16 %v342
  %v427 = vunpack.c.l.b16 %v343
  %v428 = vunpack.c.h.b16 %v343
  %v429 = vunpack.c.l.b16 %v344
  %v430 = vunpack.c.h.b16 %v344
  %v431 = vunpack.c.l.b16 %v345
  %v432 = vunpack.c.h.b16 %v345
  %v433 = vunpack.c.l.b16 %v346
  %v434 = vunpack.c.h.b16 %v346
  %v435 = vunpack.c.l.b16 %v347
  %v436 = vunpack.c.h.b16 %v347
  %v437 = vunpack.c.l.b16 %v348
  %v438 = vunpack.c.h.b16 %v348
  %v439 = vunpack.c.l.b16 %v349
  %v440 = vunpack.c.h.b16 %v349
  %v441 = vunpack.c.l.b16 %v350
  %v442 = vunpack.c.h.b16 %v350
  %v443 = vunpack.c.l.b16 %v351
  %v444 = vunpack.c.h.b16 %v351
  %v445 = vunpack.c.l.b16 %v352
  %v446 = vunpack.c.h.b16 %v352
  %v447 = vunpack.c.l.b16 %v353
  %v448 = vunpack.c.h.b16 %v353
  %v449 = vunpack.c.l.b16 %v354
  %v450 = vunpack.c.h.b16 %v354
  %v451 = vpack.c.b16 %v391, %v387
  %v452 = vpack.c.b16 %v392, %v388
  %v453 = vpack.c.b16 %v393, %v389
  %v454 = vpack.c.b16 %v394, %v390
  %v455 = vpack.c.b16 %v399, %v395
  %v456 = vpack.c.b16 %v400, %v396
  %v457 = vpack.c.b16 %v401, %v397
  %v458 = vpack.c.b16 %v402, %v398
  %v459 = vpack.c.b16 %v407, %v403
  %v460 = vpack.c.b16 %v408, %v404
  %v461 = vpack.c.b16 %v409, %v405
  %v462 = vpack.c.b16 %v410, %v406
  %v463 = vpack.c.b16 %v415, %v411
  %v464 = vpack.c.b16 %v416, %v412
  %v465 = vpack.c.b16 %v417, %v413
  %v466 = vpack.c.b16 %v418, %v414
  %v467 = vpack.c.b16 %v423, %v419
  %v468 = vpack.c.b16 %v424, %v420
  %v469 = vpack.c.b16 %v425, %v421
  %v470 = vpack.c.b16 %v426, %v422
  %v471 = vpack.c.b16 %v431, %v427
  %v472 = vpack.c.b16 %v432, %v428
  %v473 = vpack.c.b16 %v433, %v429
  %v474 = vpack.c.b16 %v434, %v430
  %v475 = vpack.c.b16 %v439, %v435
  %v476 = vpack.c.b16 %v440, %v436
  %v477 = vpack.c.b16 %v441, %v437
  %v478 = vpack.c.b16 %v442, %v438
  %v479 = vpack.c.b16 %v447, %v443
  %v480 = vpack.c.b16 %v448, %v444
  %v481 = vpack.c.b16 %v449, %v445
  %v482 = vpack.c.b16 %v450, %v446
  %515 = vmatprep.subr.bf16.mxu0 %v452
  %516 = vmatpush1.bf16.msra.mxu0 %v451
  %517 = vmatprep.subr.bf16.mxu0 %v456
  %518 = vmatpush1.bf16.msra.mxu0 %v455
  %519 = vmatprep.subr.bf16.mxu0 %v460
  %520 = vmatpush1.bf16.msra.mxu0 %v459
  %521 = vmatprep.subr.bf16.mxu0 %v464
  %522 = vmatpush1.bf16.msra.mxu0 %v463
  %523 = vmatprep.subr.bf16.mxu0 %v468
  %524 = vmatpush1.bf16.msra.mxu0 %v467
  %525 = vmatprep.subr.bf16.mxu0 %v472
  %526 = vmatpush1.bf16.msra.mxu0 %v471
  %527 = vmatprep.subr.bf16.mxu0 %v476
  %528 = vmatpush1.bf16.msra.mxu0 %v475
  %529 = vmatprep.subr.bf16.mxu0 %v480
  %530 = vmatpush1.bf16.msra.mxu0 %v479
  %531 = vmatprep.subr.bf16.mxu0 0
  %532 = vmatpush1.bf16.msra.mxu0 0
  %533 = vmatprep.subr.bf16.mxu0 0
  %534 = vmatpush1.bf16.msra.mxu0 0
  %535 = vmatprep.subr.bf16.mxu0 0
  %536 = vmatpush1.bf16.msra.mxu0 0
  %537 = vmatprep.subr.bf16.mxu0 0
  %538 = vmatpush1.bf16.msra.mxu0 0
  %539 = vmatprep.subr.bf16.mxu0 0
  %540 = vmatpush1.bf16.msra.mxu0 0
  %541 = vmatprep.subr.bf16.mxu0 0
  %542 = vmatpush1.bf16.msra.mxu0 0
  %543 = vmatprep.subr.bf16.mxu0 0
  %544 = vmatpush1.bf16.msra.mxu0 0
  %545 = vmatprep.subr.bf16.mxu0 0
  %546 = vmatpush1.bf16.msra.mxu0 0
  %547 = vmatprep.mubr.bf16.mxu0 0
  %548 = vmatmul.mubr.bf16.gmra.mrb[0].mxu0 0
  %v549 = vpop.f32.mrb[0].mxu0
  %v550 = vadd.f32 0.0, %v549
  %v551 = vpop.f32.mrb[0].mxu0
  %v552 = vadd.f32 0.0, %v551
  %v553 = vpop.f32.mrb[0].mxu0
  %v554 = vpop.f32.mrb[0].mxu0
  %555 = vdwg.mxu0
  %556 = vmatprep.subr.bf16.mxu0 %v454
  %557 = vmatpush1.bf16.msra.mxu0 %v453
  %558 = vmatprep.subr.bf16.mxu0 %v458
  %559 = vmatpush1.bf16.msra.mxu0 %v457
  %560 = vmatprep.subr.bf16.mxu0 %v462
  %561 = vmatpush1.bf16.msra.mxu0 %v461
  %562 = vmatprep.subr.bf16.mxu0 %v466
  %563 = vmatpush1.bf16.msra.mxu0 %v465
  %564 = vmatprep.subr.bf16.mxu0 %v470
  %565 = vmatpush1.bf16.msra.mxu0 %v469
  %566 = vmatprep.subr.bf16.mxu0 %v474
  %567 = vmatpush1.bf16.msra.mxu0 %v473
  %568 = vmatprep.subr.bf16.mxu0 %v478
  %569 = vmatpush1.bf16.msra.mxu0 %v477
  %570 = vmatprep.subr.bf16.mxu0 %v482
  %571 = vmatpush1.bf16.msra.mxu0 %v481
  %572 = vmatprep.subr.bf16.mxu0 0
  %573 = vmatpush1.bf16.msra.mxu0 0
  %574 = vmatprep.subr.bf16.mxu0 0
  %575 = vmatpush1.bf16.msra.mxu0 0
  %576 = vmatprep.subr.bf16.mxu0 0
  %577 = vmatpush1.bf16.msra.mxu0 0
  %578 = vmatprep.subr.bf16.mxu0 0
  %579 = vmatpush1.bf16.msra.mxu0 0
  %580 = vmatprep.subr.bf16.mxu0 0
  %581 = vmatpush1.bf16.msra.mxu0 0
  %582 = vmatprep.subr.bf16.mxu0 0
  %583 = vmatpush1.bf16.msra.mxu0 0
  %584 = vmatprep.subr.bf16.mxu0 0
  %585 = vmatpush1.bf16.msra.mxu0 0
  %586 = vmatprep.subr.bf16.mxu0 0
  %587 = vmatpush1.bf16.msra.mxu0 0
  %588 = vmatprep.mubr.bf16.mxu0 0
  %589 = vmatmul.mubr.bf16.gmra.mrb[0].mxu0 0
  %v590 = vpop.f32.mrb[0].mxu0
  %v591 = vadd.f32 0.0, %v590
  %v592 = vpop.f32.mrb[0].mxu0
  %v593 = vadd.f32 0.0, %v592
  %v594 = vpop.f32.mrb[0].mxu0
  %v595 = vpop.f32.mrb[0].mxu0
  %596 = vdwg.mxu0
  %v597 = vadd.f32 %v164, %v550
  %v598 = vadd.f32 %v166, %v552
  %v599 = vadd.f32 %v277, %v591
  %v600 = vadd.f32 %v279, %v593
  %v601 = vmul.f32 %v597, 0.5
  %v602 = vmul.f32 %v598, 0.5
  %v603 = vmul.f32 %v599, 0.5
  %v604 = vtanh.pop %v601
  %v605 = vtanh.pop %v602
  %v606 = vtanh.pop %v603
  %v607 = vmul.f32 %v604, 0.5
  %v608 = vmul.f32 %v605, 0.5
  %v609 = vmul.f32 %v606, 0.5
  %v610 = vadd.f32 %v607, 0.5
  %v611 = vadd.f32 %v608, 0.5
  %v612 = vadd.f32 %v609, 0.5
  %v613 = vtanh.pop %v600
  %v614 = vmul.f32 %v611, 0.0
  %v615 = vmul.f32 %v610, %v613
  %v616 = vadd.f32 %v614, %v615
  %v617 = vtanh.pop %v616
  %v618 = vmul.f32 %v612, %v617
  %v619 = vpack.c.bf16 %v618, %v618
  %620 = vmatprep.subr.bf16.mxu0 %v452
  %621 = vmatpush1.bf16.msra.mxu0 %v451
  %622 = vmatprep.subr.bf16.mxu0 %v456
  %623 = vmatpush1.bf16.msra.mxu0 %v455
  %624 = vmatprep.subr.bf16.mxu0 %v460
  %625 = vmatpush1.bf16.msra.mxu0 %v459
  %626 = vmatprep.subr.bf16.mxu0 %v464
  %627 = vmatpush1.bf16.msra.mxu0 %v463
  %628 = vmatprep.subr.bf16.mxu0 %v468
  %629 = vmatpush1.bf16.msra.mxu0 %v467
  %630 = vmatprep.subr.bf16.mxu0 %v472
  %631 = vmatpush1.bf16.msra.mxu0 %v471
  %632 = vmatprep.subr.bf16.mxu0 %v476
  %633 = vmatpush1.bf16.msra.mxu0 %v475
  %634 = vmatprep.subr.bf16.mxu0 %v480
  %635 = vmatpush1.bf16.msra.mxu0 %v479
  %636 = vmatprep.subr.bf16.mxu0 0
  %637 = vmatpush1.bf16.msra.mxu0 0
  %638 = vmatprep.subr.bf16.mxu0 0
  %639 = vmatpush1.bf16.msra.mxu0 0
  %640 = vmatprep.subr.bf16.mxu0 0
  %641 = vmatpush1.bf16.msra.mxu0 0
  %642 = vmatprep.subr.bf16.mxu0 0
  %643 = vmatpush1.bf16.msra.mxu0 0
  %644 = vmatprep.subr.bf16.mxu0 0
  %645 = vmatpush1.bf16.msra.mxu0 0
  %646 = vmatprep.subr.bf16.mxu0 0
  %647 = vmatpush1.bf16.msra.mxu0 0
  %648 = vmatprep.subr.bf16.mxu0 0
  %649 = vmatpush1.bf16.msra.mxu0 0
  %650 = vmatprep.subr.bf16.mxu0 0
  %651 = vmatpush1.bf16.msra.mxu0 0
  %652 = vmatprep.mubr.bf16.mxu0 0
  %653 = vmatmul.mubr.bf16.gmra.mrb[0].mxu0 %v619
  %v654 = vpop.f32.mrb[0].mxu0
  %v655 = vadd.f32 0.0, %v654
  %v656 = vpop.f32.mrb[0].mxu0
  %v657 = vadd.f32 0.0, %v656
  %v658 = vpop.f32.mrb[0].mxu0
  %v659 = vpop.f32.mrb[0].mxu0
  %660 = vdwg.mxu0
  %661 = vmatprep.subr.bf16.mxu0 %v454
  %662 = vmatpush1.bf16.msra.mxu0 %v453
  %663 = vmatprep.subr.bf16.mxu0 %v458
  %664 = vmatpush1.bf16.msra.mxu0 %v457
  %665 = vmatprep.subr.bf16.mxu0 %v462
  %666 = vmatpush1.bf16.msra.mxu0 %v461
  %667 = vmatprep.subr.bf16.mxu0 %v466
  %668 = vmatpush1.bf16.msra.mxu0 %v465
  %669 = vmatprep.subr.bf16.mxu0 %v470
  %670 = vmatpush1.bf16.msra.mxu0 %v469
  %671 = vmatprep.subr.bf16.mxu0 %v474
  %672 = vmatpush1.bf16.msra.mxu0 %v473
  %673 = vmatprep.subr.bf16.mxu0 %v478
  %674 = vmatpush1.bf16.msra.mxu0 %v477
  %675 = vmatprep.subr.bf16.mxu0 %v482
  %676 = vmatpush1.bf16.msra.mxu0 %v481
  %677 = vmatprep.subr.bf16.mxu0 0
  %678 = vmatpush1.bf16.msra.mxu0 0
  %679 = vmatprep.subr.bf16.mxu0 0
  %680 = vmatpush1.bf16.msra.mxu0 0
  %681 = vmatprep.subr.bf16.mxu0 0
  %682 = vmatpush1.bf16.msra.mxu0 0
  %683 = vmatprep.subr.bf16.mxu0 0
  %684 = vmatpush1.bf16.msra.mxu0 0
  %685 = vmatprep.subr.bf16.mxu0 0
  %686 = vmatpush1.bf16.msra.mxu0 0
  %687 = vmatprep.subr.bf16.mxu0 0
  %688 = vmatpush1.bf16.msra.mxu0 0
  %689 = vmatprep.subr.bf16.mxu0 0
  %690 = vmatpush1.bf16.msra.mxu0 0
  %691 = vmatprep.subr.bf16.mxu0 0
  %692 = vmatpush1.bf16.msra.mxu0 0
  %693 = vmatprep.mubr.bf16.mxu0 0
  %694 = vmatmul.mubr.bf16.gmra.mrb[0].mxu0 %v619
  %v695 = vpop.f32.mrb[0].mxu0
  %v696 = vadd.f32 0.0, %v695
  %v697 = vpop.f32.mrb[0].mxu0
  %v698 = vadd.f32 0.0, %v697
  %v699 = vpop.f32.mrb[0].mxu0
  %v700 = vpop.f32.mrb[0].mxu0
  %701 = vdwg.mxu0
  %v702 = vadd.f32 %v170, %v655
  %v703 = vadd.f32 %v172, %v657
  %v704 = vadd.f32 %v283, %v696
  %v705 = vadd.f32 %v285, %v698
  %v706 = vmul.f32 %v702, 0.5
  %v707 = vmul.f32 %v703, 0.5
  %v708 = vmul.f32 %v704, 0.5
  %v709 = vtanh.pop %v706
  %v710 = vtanh.pop %v707
  %v711 = vtanh.pop %v708
  %v712 = vmul.f32 %v709, 0.5
  %v713 = vmul.f32 %v710, 0.5
  %v714 = vmul.f32 %v711, 0.5
  %v715 = vadd.f32 %v712, 0.5
  %v716 = vadd.f32 %v713, 0.5
  %v717 = vadd.f32 %v714, 0.5
  %v718 = vtanh.pop %v705
  %v719 = vmul.f32 %v716, %v616
  %v720 = vmul.f32 %v715, %v718
  %v721 = vadd.f32 %v719, %v720
  %v722 = vtanh.pop %v721
  %v723 = vmul.f32 %v717, %v722
  %v724 = vpack.c.bf16 %v723, %v723
  %725 = vmatprep.subr.bf16.mxu0 %v452
  %726 = vmatpush1.bf16.msra.mxu0 %v451
  %727 = vmatprep.subr.bf16.mxu0 %v456
  %728 = vmatpush1.bf16.msra.mxu0 %v455
  %729 = vmatprep.subr.bf16.mxu0 %v460
  %730 = vmatpush1.bf16.msra.mxu0 %v459
  %731 = vmatprep.subr.bf16.mxu0 %v464
  %732 = vmatpush1.bf16.msra.mxu0 %v463
  %733 = vmatprep.subr.bf16.mxu0 %v468
  %734 = vmatpush1.bf16.msra.mxu0 %v467
  %735 = vmatprep.subr.bf16.mxu0 %v472
  %736 = vmatpush1.bf16.msra.mxu0 %v471
  %737 = vmatprep.subr.bf16.mxu0 %v476
  %738 = vmatpush1.bf16.msra.mxu0 %v475
  %739 = vmatprep.subr.bf16.mxu0 %v480
  %740 = vmatpush1.bf16.msra.mxu0 %v479
  %741 = vmatprep.subr.bf16.mxu0 0
  %742 = vmatpush1.bf16.msra.mxu0 0
  %743 = vmatprep.subr.bf16.mxu0 0
  %744 = vmatpush1.bf16.msra.mxu0 0
  %745 = vmatprep.subr.bf16.mxu0 0
  %746 = vmatpush1.bf16.msra.mxu0 0
  %747 = vmatprep.subr.bf16.mxu0 0
  %748 = vmatpush1.bf16.msra.mxu0 0
  %749 = vmatprep.subr.bf16.mxu0 0
  %750 = vmatpush1.bf16.msra.mxu0 0
  %751 = vmatprep.subr.bf16.mxu0 0
  %752 = vmatpush1.bf16.msra.mxu0 0
  %753 = vmatprep.subr.bf16.mxu0 0
  %754 = vmatpush1.bf16.msra.mxu0 0
  %755 = vmatprep.subr.bf16.mxu0 0
  %756 = vmatpush1.bf16.msra.mxu0 0
  %757 = vmatprep.mubr.bf16.mxu0 0
  %758 = vmatmul.mubr.bf16.gmra.mrb[0].mxu0 %v724
  %v759 = vpop.f32.mrb[0].mxu0
  %v760 = vadd.f32 0.0, %v759
  %v761 = vpop.f32.mrb[0].mxu0
  %v762 = vadd.f32 0.0, %v761
  %v763 = vpop.f32.mrb[0].mxu0
  %v764 = vpop.f32.mrb[0].mxu0
  %765 = vdwg.mxu0
  %766 = vmatprep.subr.bf16.mxu0 %v454
  %767 = vmatpush1.bf16.msra.mxu0 %v453
  %768 = vmatprep.subr.bf16.mxu0 %v458
  %769 = vmatpush1.bf16.msra.mxu0 %v457
  %770 = vmatprep.subr.bf16.mxu0 %v462
  %771 = vmatpush1.bf16.msra.mxu0 %v461
  %772 = vmatprep.subr.bf16.mxu0 %v466
  %773 = vmatpush1.bf16.msra.mxu0 %v465
  %774 = vmatprep.subr.bf16.mxu0 %v470
  %775 = vmatpush1.bf16.msra.mxu0 %v469
  %776 = vmatprep.subr.bf16.mxu0 %v474
  %777 = vmatpush1.bf16.msra.mxu0 %v473
  %778 = vmatprep.subr.bf16.mxu0 %v478
  %779 = vmatpush1.bf16.msra.mxu0 %v477
  %780 = vmatprep.subr.bf16.mxu0 %v482
  %781 = vmatpush1.bf16.msra.mxu0 %v481
  %782 = vmatprep.subr.bf16.mxu0 0
  %783 = vmatpush1.bf16.msra.mxu0 0
  %784 = vmatprep.subr.bf16.mxu0 0
  %785 = vmatpush1.bf16.msra.mxu0 0
  %786 = vmatprep.subr.bf16.mxu0 0
  %787 = vmatpush1.bf16.msra.mxu0 0
  %788 = vmatprep.subr.bf16.mxu0 0
  %789 = vmatpush1.bf16.msra.mxu0 0
  %790 = vmatprep.subr.bf16.mxu0 0
  %791 = vmatpush1.bf16.msra.mxu0 0
  %792 = vmatprep.subr.bf16.mxu0 0
  %793 = vmatpush1.bf16.msra.mxu0 0
  %794 = vmatprep.subr.bf16.mxu0 0
  %795 = vmatpush1.bf16.msra.mxu0 0
  %796 = vmatprep.subr.bf16.mxu0 0
  %797 = vmatpush1.bf16.msra.mxu0 0
  %798 = vmatprep.mubr.bf16.mxu0 0
  %799 = vmatmul.mubr.bf16.gmra.mrb[0].mxu0 %v724
  %v800 = vpop.f32.mrb[0].mxu0
  %v801 = vadd.f32 0.0, %v800
  %v802 = vpop.f32.mrb[0].mxu0
  %v803 = vadd.f32 0.0, %v802
  %v804 = vpop.f32.mrb[0].mxu0
  %v805 = vpop.f32.mrb[0].mxu0
  %806 = vdwg.mxu0
  %v807 = vadd.f32 %v176, %v760
  %v808 = vadd.f32 %v178, %v762
  %v809 = vadd.f32 %v289, %v801
  %v810 = vadd.f32 %v291, %v803
  %v811 = vmul.f32 %v807, 0.5
  %v812 = vmul.f32 %v808, 0.5
  %v813 = vmul.f32 %v809, 0.5
  %v814 = vtanh.pop %v811
  %v815 = vtanh.pop %v812
  %v816 = vtanh.pop %v813
  %v817 = vmul.f32 %v814, 0.5
  %v818 = vmul.f32 %v815, 0.5
  %v819 = vmul.f32 %v816, 0.5
  %v820 = vadd.f32 %v817, 0.5
  %v821 = vadd.f32 %v818, 0.5
  %v822 = vadd.f32 %v819, 0.5
  %v823 = vtanh.pop %v810
  %v824 = vmul.f32 %v821, %v721
  %v825 = vmul.f32 %v820, %v823
  %v826 = vadd.f32 %v824, %v825
  %v827 = vtanh.pop %v826
  %v828 = vmul.f32 %v822, %v827
  %v829 = vpack.c.bf16 %v828, %v828
  %830 = vmatprep.subr.bf16.mxu0 %v452
  %831 = vmatpush1.bf16.msra.mxu0 %v451
  %832 = vmatprep.subr.bf16.mxu0 %v456
  %833 = vmatpush1.bf16.msra.mxu0 %v455
  %834 = vmatprep.subr.bf16.mxu0 %v460
  %835 = vmatpush1.bf16.msra.mxu0 %v459
  %836 = vmatprep.subr.bf16.mxu0 %v464
  %837 = vmatpush1.bf16.msra.mxu0 %v463
  %838 = vmatprep.subr.bf16.mxu0 %v468
  %839 = vmatpush1.bf16.msra.mxu0 %v467
  %840 = vmatprep.subr.bf16.mxu0 %v472
  %841 = vmatpush1.bf16.msra.mxu0 %v471
  %842 = vmatprep.subr.bf16.mxu0 %v476
  %843 = vmatpush1.bf16.msra.mxu0 %v475
  %844 = vmatprep.subr.bf16.mxu0 %v480
  %845 = vmatpush1.bf16.msra.mxu0 %v479
  %846 = vmatprep.subr.bf16.mxu0 0
  %847 = vmatpush1.bf16.msra.mxu0 0
  %848 = vmatprep.subr.bf16.mxu0 0
  %849 = vmatpush1.bf16.msra.mxu0 0
  %850 = vmatprep.subr.bf16.mxu0 0
  %851 = vmatpush1.bf16.msra.mxu0 0
  %852 = vmatprep.subr.bf16.mxu0 0
  %853 = vmatpush1.bf16.msra.mxu0 0
  %854 = vmatprep.subr.bf16.mxu0 0
  %855 = vmatpush1.bf16.msra.mxu0 0
  %856 = vmatprep.subr.bf16.mxu0 0
  %857 = vmatpush1.bf16.msra.mxu0 0
  %858 = vmatprep.subr.bf16.mxu0 0
  %859 = vmatpush1.bf16.msra.mxu0 0
  %860 = vmatprep.subr.bf16.mxu0 0
  %861 = vmatpush1.bf16.msra.mxu0 0
  %862 = vmatprep.mubr.bf16.mxu0 0
  %863 = vmatmul.mubr.bf16.gmra.mrb[0].mxu0 %v829
  %v864 = vpop.f32.mrb[0].mxu0
  %v865 = vadd.f32 0.0, %v864
  %v866 = vpop.f32.mrb[0].mxu0
  %v867 = vadd.f32 0.0, %v866
  %v868 = vpop.f32.mrb[0].mxu0
  %v869 = vpop.f32.mrb[0].mxu0
  %870 = vdwg.mxu0
  %871 = vmatprep.subr.bf16.mxu0 %v454
  %872 = vmatpush1.bf16.msra.mxu0 %v453
  %873 = vmatprep.subr.bf16.mxu0 %v458
  %874 = vmatpush1.bf16.msra.mxu0 %v457
  %875 = vmatprep.subr.bf16.mxu0 %v462
  %876 = vmatpush1.bf16.msra.mxu0 %v461
  %877 = vmatprep.subr.bf16.mxu0 %v466
  %878 = vmatpush1.bf16.msra.mxu0 %v465
  %879 = vmatprep.subr.bf16.mxu0 %v470
  %880 = vmatpush1.bf16.msra.mxu0 %v469
  %881 = vmatprep.subr.bf16.mxu0 %v474
  %882 = vmatpush1.bf16.msra.mxu0 %v473
  %883 = vmatprep.subr.bf16.mxu0 %v478
  %884 = vmatpush1.bf16.msra.mxu0 %v477
  %885 = vmatprep.subr.bf16.mxu0 %v482
  %886 = vmatpush1.bf16.msra.mxu0 %v481
  %887 = vmatprep.subr.bf16.mxu0 0
  %888 = vmatpush1.bf16.msra.mxu0 0
  %889 = vmatprep.subr.bf16.mxu0 0
  %890 = vmatpush1.bf16.msra.mxu0 0
  %891 = vmatprep.subr.bf16.mxu0 0
  %892 = vmatpush1.bf16.msra.mxu0 0
  %893 = vmatprep.subr.bf16.mxu0 0
  %894 = vmatpush1.bf16.msra.mxu0 0
  %895 = vmatprep.subr.bf16.mxu0 0
  %896 = vmatpush1.bf16.msra.mxu0 0
  %897 = vmatprep.subr.bf16.mxu0 0
  %898 = vmatpush1.bf16.msra.mxu0 0
  %899 = vmatprep.subr.bf16.mxu0 0
  %900 = vmatpush1.bf16.msra.mxu0 0
  %901 = vmatprep.subr.bf16.mxu0 0
  %902 = vmatpush1.bf16.msra.mxu0 0
  %903 = vmatprep.mubr.bf16.mxu0 0
  %904 = vmatmul.mubr.bf16.gmra.mrb[0].mxu0 %v829
  %v905 = vpop.f32.mrb[0].mxu0
  %v906 = vadd.f32 0.0, %v905
  %v907 = vpop.f32.mrb[0].mxu0
  %v908 = vadd.f32 0.0, %v907
  %v909 = vpop.f32.mrb[0].mxu0
  %v910 = vpop.f32.mrb[0].mxu0
  %911 = vdwg.mxu0
  %v912 = vadd.f32 %v182, %v865
  %v913 = vadd.f32 %v184, %v867
  %v914 = vadd.f32 %v295, %v906
  %v915 = vadd.f32 %v297, %v908
  %v916 = vmul.f32 %v912, 0.5
  %v917 = vmul.f32 %v913, 0.5
  %v918 = vmul.f32 %v914, 0.5
  %v919 = vtanh.pop %v916
  %v920 = vtanh.pop %v917
  %v921 = vtanh.pop %v918
  %v922 = vmul.f32 %v919, 0.5
  %v923 = vmul.f32 %v920, 0.5
  %v924 = vmul.f32 %v921, 0.5
  %v925 = vadd.f32 %v922, 0.5
  %v926 = vadd.f32 %v923, 0.5
  %v927 = vadd.f32 %v924, 0.5
  %v928 = vtanh.pop %v915
  %v929 = vmul.f32 %v926, %v826
  %v930 = vmul.f32 %v925, %v928
  %v931 = vadd.f32 %v929, %v930
  %v932 = vtanh.pop %v931
  %v933 = vmul.f32 %v927, %v932
  %v934 = vpack.c.bf16 %v933, %v933
  %935 = vmatprep.subr.bf16.mxu0 %v452
  %936 = vmatpush1.bf16.msra.mxu0 %v451
  %937 = vmatprep.subr.bf16.mxu0 %v456
  %938 = vmatpush1.bf16.msra.mxu0 %v455
  %939 = vmatprep.subr.bf16.mxu0 %v460
  %940 = vmatpush1.bf16.msra.mxu0 %v459
  %941 = vmatprep.subr.bf16.mxu0 %v464
  %942 = vmatpush1.bf16.msra.mxu0 %v463
  %943 = vmatprep.subr.bf16.mxu0 %v468
  %944 = vmatpush1.bf16.msra.mxu0 %v467
  %945 = vmatprep.subr.bf16.mxu0 %v472
  %946 = vmatpush1.bf16.msra.mxu0 %v471
  %947 = vmatprep.subr.bf16.mxu0 %v476
  %948 = vmatpush1.bf16.msra.mxu0 %v475
  %949 = vmatprep.subr.bf16.mxu0 %v480
  %950 = vmatpush1.bf16.msra.mxu0 %v479
  %951 = vmatprep.subr.bf16.mxu0 0
  %952 = vmatpush1.bf16.msra.mxu0 0
  %953 = vmatprep.subr.bf16.mxu0 0
  %954 = vmatpush1.bf16.msra.mxu0 0
  %955 = vmatprep.subr.bf16.mxu0 0
  %956 = vmatpush1.bf16.msra.mxu0 0
  %957 = vmatprep.subr.bf16.mxu0 0
  %958 = vmatpush1.bf16.msra.mxu0 0
  %959 = vmatprep.subr.bf16.mxu0 0
  %960 = vmatpush1.bf16.msra.mxu0 0
  %961 = vmatprep.subr.bf16.mxu0 0
  %962 = vmatpush1.bf16.msra.mxu0 0
  %963 = vmatprep.subr.bf16.mxu0 0
  %964 = vmatpush1.bf16.msra.mxu0 0
  %965 = vmatprep.subr.bf16.mxu0 0
  %966 = vmatpush1.bf16.msra.mxu0 0
  %967 = vmatprep.mubr.bf16.mxu0 0
  %968 = vmatmul.mubr.bf16.gmra.mrb[0].mxu0 %v934
  %v969 = vpop.f32.mrb[0].mxu0
  %v970 = vadd.f32 0.0, %v969
  %v971 = vpop.f32.mrb[0].mxu0
  %v972 = vadd.f32 0.0, %v971
  %v973 = vpop.f32.mrb[0].mxu0
  %v974 = vpop.f32.mrb[0].mxu0
  %975 = vdwg.mxu0
  %976 = vmatprep.subr.bf16.mxu0 %v454
  %977 = vmatpush1.bf16.msra.mxu0 %v453
  %978 = vmatprep.subr.bf16.mxu0 %v458
  %979 = vmatpush1.bf16.msra.mxu0 %v457
  %980 = vmatprep.subr.bf16.mxu0 %v462
  %981 = vmatpush1.bf16.msra.mxu0 %v461
  %982 = vmatprep.subr.bf16.mxu0 %v466
  %983 = vmatpush1.bf16.msra.mxu0 %v465
  %984 = vmatprep.subr.bf16.mxu0 %v470
  %985 = vmatpush1.bf16.msra.mxu0 %v469
  %986 = vmatprep.subr.bf16.mxu0 %v474
  %987 = vmatpush1.bf16.msra.mxu0 %v473
  %988 = vmatprep.subr.bf16.mxu0 %v478
  %989 = vmatpush1.bf16.msra.mxu0 %v477
  %990 = vmatprep.subr.bf16.mxu0 %v482
  %991 = vmatpush1.bf16.msra.mxu0 %v481
  %992 = vmatprep.subr.bf16.mxu0 0
  %993 = vmatpush1.bf16.msra.mxu0 0
  %994 = vmatprep.subr.bf16.mxu0 0
  %995 = vmatpush1.bf16.msra.mxu0 0
  %996 = vmatprep.subr.bf16.mxu0 0
  %997 = vmatpush1.bf16.msra.mxu0 0
  %998 = vmatprep.subr.bf16.mxu0 0
  %999 = vmatpush1.bf16.msra.mxu0 0
  %1000 = vmatprep.subr.bf16.mxu0 0
  %1001 = vmatpush1.bf16.msra.mxu0 0
  %1002 = vmatprep.subr.bf16.mxu0 0
  %1003 = vmatpush1.bf16.msra.mxu0 0
  %1004 = vmatprep.subr.bf16.mxu0 0
  %1005 = vmatpush1.bf16.msra.mxu0 0
  %1006 = vmatprep.subr.bf16.mxu0 0
  %1007 = vmatpush1.bf16.msra.mxu0 0
  %1008 = vmatprep.mubr.bf16.mxu0 0
  %1009 = vmatmul.mubr.bf16.gmra.mrb[0].mxu0 %v934
  %v1010 = vpop.f32.mrb[0].mxu0
  %v1011 = vadd.f32 0.0, %v1010
  %v1012 = vpop.f32.mrb[0].mxu0
  %v1013 = vadd.f32 0.0, %v1012
  %v1014 = vpop.f32.mrb[0].mxu0
  %v1015 = vpop.f32.mrb[0].mxu0
  %1016 = vdwg.mxu0
  %v1017 = vadd.f32 %v188, %v970
  %v1018 = vadd.f32 %v190, %v972
  %v1019 = vadd.f32 %v301, %v1011
  %v1020 = vadd.f32 %v303, %v1013
  %v1021 = vmul.f32 %v1017, 0.5
  %v1022 = vmul.f32 %v1018, 0.5
  %v1023 = vmul.f32 %v1019, 0.5
  %v1024 = vtanh.pop %v1021
  %v1025 = vtanh.pop %v1022
  %v1026 = vtanh.pop %v1023
  %v1027 = vmul.f32 %v1024, 0.5
  %v1028 = vmul.f32 %v1025, 0.5
  %v1029 = vmul.f32 %v1026, 0.5
  %v1030 = vadd.f32 %v1027, 0.5
  %v1031 = vadd.f32 %v1028, 0.5
  %v1032 = vadd.f32 %v1029, 0.5
  %v1033 = vtanh.pop %v1020
  %v1034 = vmul.f32 %v1031, %v931
  %v1035 = vmul.f32 %v1030, %v1033
  %v1036 = vadd.f32 %v1034, %v1035
  %v1037 = vtanh.pop %v1036
  %v1038 = vmul.f32 %v1032, %v1037
  %v1039 = vpack.c.bf16 %v1038, %v1038
  %1040 = vmatprep.subr.bf16.mxu0 %v452
  %1041 = vmatpush1.bf16.msra.mxu0 %v451
  %1042 = vmatprep.subr.bf16.mxu0 %v456
  %1043 = vmatpush1.bf16.msra.mxu0 %v455
  %1044 = vmatprep.subr.bf16.mxu0 %v460
  %1045 = vmatpush1.bf16.msra.mxu0 %v459
  %1046 = vmatprep.subr.bf16.mxu0 %v464
  %1047 = vmatpush1.bf16.msra.mxu0 %v463
  %1048 = vmatprep.subr.bf16.mxu0 %v468
  %1049 = vmatpush1.bf16.msra.mxu0 %v467
  %1050 = vmatprep.subr.bf16.mxu0 %v472
  %1051 = vmatpush1.bf16.msra.mxu0 %v471
  %1052 = vmatprep.subr.bf16.mxu0 %v476
  %1053 = vmatpush1.bf16.msra.mxu0 %v475
  %1054 = vmatprep.subr.bf16.mxu0 %v480
  %1055 = vmatpush1.bf16.msra.mxu0 %v479
  %1056 = vmatprep.subr.bf16.mxu0 0
  %1057 = vmatpush1.bf16.msra.mxu0 0
  %1058 = vmatprep.subr.bf16.mxu0 0
  %1059 = vmatpush1.bf16.msra.mxu0 0
  %1060 = vmatprep.subr.bf16.mxu0 0
  %1061 = vmatpush1.bf16.msra.mxu0 0
  %1062 = vmatprep.subr.bf16.mxu0 0
  %1063 = vmatpush1.bf16.msra.mxu0 0
  %1064 = vmatprep.subr.bf16.mxu0 0
  %1065 = vmatpush1.bf16.msra.mxu0 0
  %1066 = vmatprep.subr.bf16.mxu0 0
  %1067 = vmatpush1.bf16.msra.mxu0 0
  %1068 = vmatprep.subr.bf16.mxu0 0
  %1069 = vmatpush1.bf16.msra.mxu0 0
  %1070 = vmatprep.subr.bf16.mxu0 0
  %1071 = vmatpush1.bf16.msra.mxu0 0
  %1072 = vmatprep.mubr.bf16.mxu0 0
  %1073 = vmatmul.mubr.bf16.gmra.mrb[0].mxu0 %v1039
  %v1074 = vpop.f32.mrb[0].mxu0
  %v1075 = vadd.f32 0.0, %v1074
  %v1076 = vpop.f32.mrb[0].mxu0
  %v1077 = vadd.f32 0.0, %v1076
  %v1078 = vpop.f32.mrb[0].mxu0
  %v1079 = vpop.f32.mrb[0].mxu0
  %1080 = vdwg.mxu0
  %1081 = vmatprep.subr.bf16.mxu0 %v454
  %1082 = vmatpush1.bf16.msra.mxu0 %v453
  %1083 = vmatprep.subr.bf16.mxu0 %v458
  %1084 = vmatpush1.bf16.msra.mxu0 %v457
  %1085 = vmatprep.subr.bf16.mxu0 %v462
  %1086 = vmatpush1.bf16.msra.mxu0 %v461
  %1087 = vmatprep.subr.bf16.mxu0 %v466
  %1088 = vmatpush1.bf16.msra.mxu0 %v465
  %1089 = vmatprep.subr.bf16.mxu0 %v470
  %1090 = vmatpush1.bf16.msra.mxu0 %v469
  %1091 = vmatprep.subr.bf16.mxu0 %v474
  %1092 = vmatpush1.bf16.msra.mxu0 %v473
  %1093 = vmatprep.subr.bf16.mxu0 %v478
  %1094 = vmatpush1.bf16.msra.mxu0 %v477
  %1095 = vmatprep.subr.bf16.mxu0 %v482
  %1096 = vmatpush1.bf16.msra.mxu0 %v481
  %1097 = vmatprep.subr.bf16.mxu0 0
  %1098 = vmatpush1.bf16.msra.mxu0 0
  %1099 = vmatprep.subr.bf16.mxu0 0
  %1100 = vmatpush1.bf16.msra.mxu0 0
  %1101 = vmatprep.subr.bf16.mxu0 0
  %1102 = vmatpush1.bf16.msra.mxu0 0
  %1103 = vmatprep.subr.bf16.mxu0 0
  %1104 = vmatpush1.bf16.msra.mxu0 0
  %1105 = vmatprep.subr.bf16.mxu0 0
  %1106 = vmatpush1.bf16.msra.mxu0 0
  %1107 = vmatprep.subr.bf16.mxu0 0
  %1108 = vmatpush1.bf16.msra.mxu0 0
  %1109 = vmatprep.subr.bf16.mxu0 0
  %1110 = vmatpush1.bf16.msra.mxu0 0
  %1111 = vmatprep.subr.bf16.mxu0 0
  %1112 = vmatpush1.bf16.msra.mxu0 0
  %1113 = vmatprep.mubr.bf16.mxu0 0
  %1114 = vmatmul.mubr.bf16.gmra.mrb[0].mxu0 %v1039
  %v1115 = vpop.f32.mrb[0].mxu0
  %v1116 = vadd.f32 0.0, %v1115
  %v1117 = vpop.f32.mrb[0].mxu0
  %v1118 = vadd.f32 0.0, %v1117
  %v1119 = vpop.f32.mrb[0].mxu0
  %v1120 = vpop.f32.mrb[0].mxu0
  %1121 = vdwg.mxu0
  %v1122 = vadd.f32 %v194, %v1075
  %v1123 = vadd.f32 %v196, %v1077
  %v1124 = vadd.f32 %v307, %v1116
  %v1125 = vadd.f32 %v309, %v1118
  %v1126 = vmul.f32 %v1122, 0.5
  %v1127 = vmul.f32 %v1123, 0.5
  %v1128 = vmul.f32 %v1124, 0.5
  %v1129 = vtanh.pop %v1126
  %v1130 = vtanh.pop %v1127
  %v1131 = vtanh.pop %v1128
  %v1132 = vmul.f32 %v1129, 0.5
  %v1133 = vmul.f32 %v1130, 0.5
  %v1134 = vmul.f32 %v1131, 0.5
  %v1135 = vadd.f32 %v1132, 0.5
  %v1136 = vadd.f32 %v1133, 0.5
  %v1137 = vadd.f32 %v1134, 0.5
  %v1138 = vtanh.pop %v1125
  %v1139 = vmul.f32 %v1136, %v1036
  %v1140 = vmul.f32 %v1135, %v1138
  %v1141 = vadd.f32 %v1139, %v1140
  %v1142 = vtanh.pop %v1141
  %v1143 = vmul.f32 %v1137, %v1142
  %v1144 = vpack.c.bf16 %v1143, %v1143
  %1145 = vmatprep.subr.bf16.mxu0 %v452
  %1146 = vmatpush1.bf16.msra.mxu0 %v451
  %1147 = vmatprep.subr.bf16.mxu0 %v456
  %1148 = vmatpush1.bf16.msra.mxu0 %v455
  %1149 = vmatprep.subr.bf16.mxu0 %v460
  %1150 = vmatpush1.bf16.msra.mxu0 %v459
  %1151 = vmatprep.subr.bf16.mxu0 %v464
  %1152 = vmatpush1.bf16.msra.mxu0 %v463
  %1153 = vmatprep.subr.bf16.mxu0 %v468
  %1154 = vmatpush1.bf16.msra.mxu0 %v467
  %1155 = vmatprep.subr.bf16.mxu0 %v472
  %1156 = vmatpush1.bf16.msra.mxu0 %v471
  %1157 = vmatprep.subr.bf16.mxu0 %v476
  %1158 = vmatpush1.bf16.msra.mxu0 %v475
  %1159 = vmatprep.subr.bf16.mxu0 %v480
  %1160 = vmatpush1.bf16.msra.mxu0 %v479
  %1161 = vmatprep.subr.bf16.mxu0 0
  %1162 = vmatpush1.bf16.msra.mxu0 0
  %1163 = vmatprep.subr.bf16.mxu0 0
  %1164 = vmatpush1.bf16.msra.mxu0 0
  %1165 = vmatprep.subr.bf16.mxu0 0
  %1166 = vmatpush1.bf16.msra.mxu0 0
  %1167 = vmatprep.subr.bf16.mxu0 0
  %1168 = vmatpush1.bf16.msra.mxu0 0
  %1169 = vmatprep.subr.bf16.mxu0 0
  %1170 = vmatpush1.bf16.msra.mxu0 0
  %1171 = vmatprep.subr.bf16.mxu0 0
  %1172 = vmatpush1.bf16.msra.mxu0 0
  %1173 = vmatprep.subr.bf16.mxu0 0
  %1174 = vmatpush1.bf16.msra.mxu0 0
  %1175 = vmatprep.subr.bf16.mxu0 0
  %1176 = vmatpush1.bf16.msra.mxu0 0
  %1177 = vmatprep.mubr.bf16.mxu0 0
  %1178 = vmatmul.mubr.bf16.gmra.mrb[0].mxu0 %v1144
  %v1179 = vpop.f32.mrb[0].mxu0
  %v1180 = vadd.f32 0.0, %v1179
  %v1181 = vpop.f32.mrb[0].mxu0
  %v1182 = vadd.f32 0.0, %v1181
  %v1183 = vpop.f32.mrb[0].mxu0
  %v1184 = vpop.f32.mrb[0].mxu0
  %1185 = vdwg.mxu0
  %1186 = vmatprep.subr.bf16.mxu0 %v454
  %1187 = vmatpush1.bf16.msra.mxu0 %v453
  %1188 = vmatprep.subr.bf16.mxu0 %v458
  %1189 = vmatpush1.bf16.msra.mxu0 %v457
  %1190 = vmatprep.subr.bf16.mxu0 %v462
  %1191 = vmatpush1.bf16.msra.mxu0 %v461
  %1192 = vmatprep.subr.bf16.mxu0 %v466
  %1193 = vmatpush1.bf16.msra.mxu0 %v465
  %1194 = vmatprep.subr.bf16.mxu0 %v470
  %1195 = vmatpush1.bf16.msra.mxu0 %v469
  %1196 = vmatprep.subr.bf16.mxu0 %v474
  %1197 = vmatpush1.bf16.msra.mxu0 %v473
  %1198 = vmatprep.subr.bf16.mxu0 %v478
  %1199 = vmatpush1.bf16.msra.mxu0 %v477
  %1200 = vmatprep.subr.bf16.mxu0 %v482
  %1201 = vmatpush1.bf16.msra.mxu0 %v481
  %1202 = vmatprep.subr.bf16.mxu0 0
  %1203 = vmatpush1.bf16.msra.mxu0 0
  %1204 = vmatprep.subr.bf16.mxu0 0
  %1205 = vmatpush1.bf16.msra.mxu0 0
  %1206 = vmatprep.subr.bf16.mxu0 0
  %1207 = vmatpush1.bf16.msra.mxu0 0
  %1208 = vmatprep.subr.bf16.mxu0 0
  %1209 = vmatpush1.bf16.msra.mxu0 0
  %1210 = vmatprep.subr.bf16.mxu0 0
  %1211 = vmatpush1.bf16.msra.mxu0 0
  %1212 = vmatprep.subr.bf16.mxu0 0
  %1213 = vmatpush1.bf16.msra.mxu0 0
  %1214 = vmatprep.subr.bf16.mxu0 0
  %1215 = vmatpush1.bf16.msra.mxu0 0
  %1216 = vmatprep.subr.bf16.mxu0 0
  %1217 = vmatpush1.bf16.msra.mxu0 0
  %1218 = vmatprep.mubr.bf16.mxu0 0
  %1219 = vmatmul.mubr.bf16.gmra.mrb[0].mxu0 %v1144
  %v1220 = vpop.f32.mrb[0].mxu0
  %v1221 = vadd.f32 0.0, %v1220
  %v1222 = vpop.f32.mrb[0].mxu0
  %v1223 = vadd.f32 0.0, %v1222
  %v1224 = vpop.f32.mrb[0].mxu0
  %v1225 = vpop.f32.mrb[0].mxu0
  %1226 = vdwg.mxu0
  %v1227 = vadd.f32 %v200, %v1180
  %v1228 = vadd.f32 %v202, %v1182
  %v1229 = vadd.f32 %v313, %v1221
  %v1230 = vadd.f32 %v315, %v1223
  %v1231 = vmul.f32 %v1227, 0.5
  %v1232 = vmul.f32 %v1228, 0.5
  %v1233 = vmul.f32 %v1229, 0.5
  %v1234 = vtanh.pop %v1231
  %v1235 = vtanh.pop %v1232
  %v1236 = vtanh.pop %v1233
  %v1237 = vmul.f32 %v1234, 0.5
  %v1238 = vmul.f32 %v1235, 0.5
  %v1239 = vmul.f32 %v1236, 0.5
  %v1240 = vadd.f32 %v1237, 0.5
  %v1241 = vadd.f32 %v1238, 0.5
  %v1242 = vadd.f32 %v1239, 0.5
  %v1243 = vtanh.pop %v1230
  %v1244 = vmul.f32 %v1241, %v1141
  %v1245 = vmul.f32 %v1240, %v1243
  %v1246 = vadd.f32 %v1244, %v1245
  %v1247 = vtanh.pop %v1246
  %v1248 = vmul.f32 %v1242, %v1247
  %v1249 = vpack.c.bf16 %v1248, %v1248
  %1250 = vmatprep.subr.bf16.mxu0 %v452
  %1251 = vmatpush1.bf16.msra.mxu0 %v451
  %1252 = vmatprep.subr.bf16.mxu0 %v456
  %1253 = vmatpush1.bf16.msra.mxu0 %v455
  %1254 = vmatprep.subr.bf16.mxu0 %v460
  %1255 = vmatpush1.bf16.msra.mxu0 %v459
  %1256 = vmatprep.subr.bf16.mxu0 %v464
  %1257 = vmatpush1.bf16.msra.mxu0 %v463
  %1258 = vmatprep.subr.bf16.mxu0 %v468
  %1259 = vmatpush1.bf16.msra.mxu0 %v467
  %1260 = vmatprep.subr.bf16.mxu0 %v472
  %1261 = vmatpush1.bf16.msra.mxu0 %v471
  %1262 = vmatprep.subr.bf16.mxu0 %v476
  %1263 = vmatpush1.bf16.msra.mxu0 %v475
  %1264 = vmatprep.subr.bf16.mxu0 %v480
  %1265 = vmatpush1.bf16.msra.mxu0 %v479
  %1266 = vmatprep.subr.bf16.mxu0 0
  %1267 = vmatpush1.bf16.msra.mxu0 0
  %1268 = vmatprep.subr.bf16.mxu0 0
  %1269 = vmatpush1.bf16.msra.mxu0 0
  %1270 = vmatprep.subr.bf16.mxu0 0
  %1271 = vmatpush1.bf16.msra.mxu0 0
  %1272 = vmatprep.subr.bf16.mxu0 0
  %1273 = vmatpush1.bf16.msra.mxu0 0
  %1274 = vmatprep.subr.bf16.mxu0 0
  %1275 = vmatpush1.bf16.msra.mxu0 0
  %1276 = vmatprep.subr.bf16.mxu0 0
  %1277 = vmatpush1.bf16.msra.mxu0 0
  %1278 = vmatprep.subr.bf16.mxu0 0
  %1279 = vmatpush1.bf16.msra.mxu0 0
  %1280 = vmatprep.subr.bf16.mxu0 0
  %1281 = vmatpush1.bf16.msra.mxu0 0
  %1282 = vmatprep.mubr.bf16.mxu0 0
  %1283 = vmatmul.mubr.bf16.gmra.mrb[0].mxu0 %v1249
  %v1284 = vpop.f32.mrb[0].mxu0
  %v1285 = vadd.f32 0.0, %v1284
  %v1286 = vpop.f32.mrb[0].mxu0
  %v1287 = vadd.f32 0.0, %v1286
  %v1288 = vpop.f32.mrb[0].mxu0
  %v1289 = vpop.f32.mrb[0].mxu0
  %1290 = vdwg.mxu0
  %1291 = vmatprep.subr.bf16.mxu0 %v454
  %1292 = vmatpush1.bf16.msra.mxu0 %v453
  %1293 = vmatprep.subr.bf16.mxu0 %v458
  %1294 = vmatpush1.bf16.msra.mxu0 %v457
  %1295 = vmatprep.subr.bf16.mxu0 %v462
  %1296 = vmatpush1.bf16.msra.mxu0 %v461
  %1297 = vmatprep.subr.bf16.mxu0 %v466
  %1298 = vmatpush1.bf16.msra.mxu0 %v465
  %1299 = vmatprep.subr.bf16.mxu0 %v470
  %1300 = vmatpush1.bf16.msra.mxu0 %v469
  %1301 = vmatprep.subr.bf16.mxu0 %v474
  %1302 = vmatpush1.bf16.msra.mxu0 %v473
  %1303 = vmatprep.subr.bf16.mxu0 %v478
  %1304 = vmatpush1.bf16.msra.mxu0 %v477
  %1305 = vmatprep.subr.bf16.mxu0 %v482
  %1306 = vmatpush1.bf16.msra.mxu0 %v481
  %1307 = vmatprep.subr.bf16.mxu0 0
  %1308 = vmatpush1.bf16.msra.mxu0 0
  %1309 = vmatprep.subr.bf16.mxu0 0
  %1310 = vmatpush1.bf16.msra.mxu0 0
  %1311 = vmatprep.subr.bf16.mxu0 0
  %1312 = vmatpush1.bf16.msra.mxu0 0
  %1313 = vmatprep.subr.bf16.mxu0 0
  %1314 = vmatpush1.bf16.msra.mxu0 0
  %1315 = vmatprep.subr.bf16.mxu0 0
  %1316 = vmatpush1.bf16.msra.mxu0 0
  %1317 = vmatprep.subr.bf16.mxu0 0
  %1318 = vmatpush1.bf16.msra.mxu0 0
  %1319 = vmatprep.subr.bf16.mxu0 0
  %1320 = vmatpush1.bf16.msra.mxu0 0
  %1321 = vmatprep.subr.bf16.mxu0 0
  %1322 = vmatpush1.bf16.msra.mxu0 0
  %1323 = vmatprep.mubr.bf16.mxu0 0
  %1324 = vmatmul.mubr.bf16.gmra.mrb[0].mxu0 %v1249
  %v1325 = vpop.f32.mrb[0].mxu0
  %v1326 = vadd.f32 0.0, %v1325
  %v1327 = vpop.f32.mrb[0].mxu0
  %v1328 = vadd.f32 0.0, %v1327
  %v1329 = vpop.f32.mrb[0].mxu0
  %v1330 = vpop.f32.mrb[0].mxu0
  %1331 = vdwg.mxu0
  %v1332 = vadd.f32 %v206, %v1285
  %v1333 = vadd.f32 %v208, %v1287
  %v1334 = vadd.f32 %v319, %v1326
  %v1335 = vadd.f32 %v321, %v1328
  %v1336 = vmul.f32 %v1332, 0.5
  %v1337 = vmul.f32 %v1333, 0.5
  %v1338 = vmul.f32 %v1334, 0.5
  %v1339 = vtanh.pop %v1336
  %v1340 = vtanh.pop %v1337
  %v1341 = vtanh.pop %v1338
  %v1342 = vmul.f32 %v1339, 0.5
  %v1343 = vmul.f32 %v1340, 0.5
  %v1344 = vmul.f32 %v1341, 0.5
  %v1345 = vadd.f32 %v1342, 0.5
  %v1346 = vadd.f32 %v1343, 0.5
  %v1347 = vadd.f32 %v1344, 0.5
  %v1348 = vtanh.pop %v1335
  %v1349 = vmul.f32 %v1346, %v1246
  %v1350 = vmul.f32 %v1345, %v1348
  %v1351 = vadd.f32 %v1349, %v1350
  %v1352 = vtanh.pop %v1351
  %v1353 = vmul.f32 %v1347, %v1352
  %v1354 = vpack.c.bf16 %v1353, %v1353
  %v1355 = vld [vmem:[%s4] sm:$0xff]
  %v1356 = vld [vmem:[%s4 + $0x8] sm:$0xff]
  %v1357 = vld [vmem:[%s4 + $0x10] sm:$0xff]
  %v1358 = vld [vmem:[%s4 + $0x18] sm:$0xff]
  %v1359 = vld [vmem:[%s4 + $0x20] sm:$0xff]
  %v1360 = vld [vmem:[%s4 + $0x28] sm:$0xff]
  %v1361 = vld [vmem:[%s4 + $0x30] sm:$0xff]
  %v1362 = vld [vmem:[%s4 + $0x38] sm:$0xff]
  %v1363 = vld [vmem:[%s4 + $0x40] sm:$0xff]
  %v1364 = vld [vmem:[%s4 + $0x48] sm:$0xff]
  %v1365 = vld [vmem:[%s4 + $0x50] sm:$0xff]
  %v1366 = vld [vmem:[%s4 + $0x58] sm:$0xff]
  %v1367 = vld [vmem:[%s4 + $0x60] sm:$0xff]
  %v1368 = vld [vmem:[%s4 + $0x68] sm:$0xff]
  %v1369 = vld [vmem:[%s4 + $0x70] sm:$0xff]
  %v1370 = vld [vmem:[%s4 + $0x78] sm:$0xff]
  %v1371 = vld [vmem:[%s4 + $0x80] sm:$0xff]
  %v1372 = vld [vmem:[%s4 + $0x88] sm:$0xff]
  %v1373 = vld [vmem:[%s4 + $0x90] sm:$0xff]
  %v1374 = vld [vmem:[%s4 + $0x98] sm:$0xff]
  %v1375 = vld [vmem:[%s4 + $0xa0] sm:$0xff]
  %v1376 = vld [vmem:[%s4 + $0xa8] sm:$0xff]
  %v1377 = vld [vmem:[%s4 + $0xb0] sm:$0xff]
  %v1378 = vld [vmem:[%s4 + $0xb8] sm:$0xff]
  %v1379 = vld [vmem:[%s4 + $0xc0] sm:$0xff]
  %v1380 = vld [vmem:[%s4 + $0xc8] sm:$0xff]
  %v1381 = vld [vmem:[%s4 + $0xd0] sm:$0xff]
  %v1382 = vld [vmem:[%s4 + $0xd8] sm:$0xff]
  %v1383 = vld [vmem:[%s4 + $0xe0] sm:$0xff]
  %v1384 = vld [vmem:[%s4 + $0xe8] sm:$0xff]
  %v1385 = vld [vmem:[%s4 + $0xf0] sm:$0xff]
  %v1386 = vld [vmem:[%s4 + $0xf8] sm:$0xff]
  %v1387 = vld [vmem:[%s5] sm:$0xf]
  %v1389 = vlaneseq
  %v1390 = vshrl.u32 %v1389, 7
  %v1391 = vsub.s32 0, %v1390
  %v1392 = vrot.slane %v1387, %v1391
  %v1393 = vlaneseq
  %v1394 = vshrl.u32 %v1393, 7
  %v1395 = vsub.s32 1, %v1394
  %v1396 = vrot.slane %v1387, %v1395
  %v1397 = vlaneseq
  %v1398 = vshrl.u32 %v1397, 7
  %v1399 = vsub.s32 2, %v1398
  %v1400 = vrot.slane %v1387, %v1399
  %v1401 = vlaneseq
  %v1402 = vshrl.u32 %v1401, 7
  %v1403 = vsub.s32 3, %v1402
  %v1404 = vrot.slane %v1387, %v1403
  %v1441 = vunpack.c.l.b16 %v1355
  %v1442 = vunpack.c.h.b16 %v1355
  %v1443 = vunpack.c.l.b16 %v1356
  %v1444 = vunpack.c.h.b16 %v1356
  %v1445 = vunpack.c.l.b16 %v1357
  %v1446 = vunpack.c.h.b16 %v1357
  %v1447 = vunpack.c.l.b16 %v1358
  %v1448 = vunpack.c.h.b16 %v1358
  %v1449 = vunpack.c.l.b16 %v1359
  %v1450 = vunpack.c.h.b16 %v1359
  %v1451 = vunpack.c.l.b16 %v1360
  %v1452 = vunpack.c.h.b16 %v1360
  %v1453 = vunpack.c.l.b16 %v1361
  %v1454 = vunpack.c.h.b16 %v1361
  %v1455 = vunpack.c.l.b16 %v1362
  %v1456 = vunpack.c.h.b16 %v1362
  %v1457 = vunpack.c.l.b16 %v1363
  %v1458 = vunpack.c.h.b16 %v1363
  %v1459 = vunpack.c.l.b16 %v1364
  %v1460 = vunpack.c.h.b16 %v1364
  %v1461 = vunpack.c.l.b16 %v1365
  %v1462 = vunpack.c.h.b16 %v1365
  %v1463 = vunpack.c.l.b16 %v1366
  %v1464 = vunpack.c.h.b16 %v1366
  %v1465 = vunpack.c.l.b16 %v1367
  %v1466 = vunpack.c.h.b16 %v1367
  %v1467 = vunpack.c.l.b16 %v1368
  %v1468 = vunpack.c.h.b16 %v1368
  %v1469 = vunpack.c.l.b16 %v1369
  %v1470 = vunpack.c.h.b16 %v1369
  %v1471 = vunpack.c.l.b16 %v1370
  %v1472 = vunpack.c.h.b16 %v1370
  %v1473 = vunpack.c.l.b16 %v1371
  %v1474 = vunpack.c.h.b16 %v1371
  %v1475 = vunpack.c.l.b16 %v1372
  %v1476 = vunpack.c.h.b16 %v1372
  %v1477 = vunpack.c.l.b16 %v1373
  %v1478 = vunpack.c.h.b16 %v1373
  %v1479 = vunpack.c.l.b16 %v1374
  %v1480 = vunpack.c.h.b16 %v1374
  %v1481 = vunpack.c.l.b16 %v1375
  %v1482 = vunpack.c.h.b16 %v1375
  %v1483 = vunpack.c.l.b16 %v1376
  %v1484 = vunpack.c.h.b16 %v1376
  %v1485 = vunpack.c.l.b16 %v1377
  %v1486 = vunpack.c.h.b16 %v1377
  %v1487 = vunpack.c.l.b16 %v1378
  %v1488 = vunpack.c.h.b16 %v1378
  %v1489 = vunpack.c.l.b16 %v1379
  %v1490 = vunpack.c.h.b16 %v1379
  %v1491 = vunpack.c.l.b16 %v1380
  %v1492 = vunpack.c.h.b16 %v1380
  %v1493 = vunpack.c.l.b16 %v1381
  %v1494 = vunpack.c.h.b16 %v1381
  %v1495 = vunpack.c.l.b16 %v1382
  %v1496 = vunpack.c.h.b16 %v1382
  %v1497 = vunpack.c.l.b16 %v1383
  %v1498 = vunpack.c.h.b16 %v1383
  %v1499 = vunpack.c.l.b16 %v1384
  %v1500 = vunpack.c.h.b16 %v1384
  %v1501 = vunpack.c.l.b16 %v1385
  %v1502 = vunpack.c.h.b16 %v1385
  %v1503 = vunpack.c.l.b16 %v1386
  %v1504 = vunpack.c.h.b16 %v1386
  %v1505 = vpack.c.b16 %v1445, %v1441
  %v1506 = vpack.c.b16 %v1446, %v1442
  %v1507 = vpack.c.b16 %v1447, %v1443
  %v1508 = vpack.c.b16 %v1448, %v1444
  %v1509 = vpack.c.b16 %v1453, %v1449
  %v1510 = vpack.c.b16 %v1454, %v1450
  %v1511 = vpack.c.b16 %v1455, %v1451
  %v1512 = vpack.c.b16 %v1456, %v1452
  %v1513 = vpack.c.b16 %v1461, %v1457
  %v1514 = vpack.c.b16 %v1462, %v1458
  %v1515 = vpack.c.b16 %v1463, %v1459
  %v1516 = vpack.c.b16 %v1464, %v1460
  %v1517 = vpack.c.b16 %v1469, %v1465
  %v1518 = vpack.c.b16 %v1470, %v1466
  %v1519 = vpack.c.b16 %v1471, %v1467
  %v1520 = vpack.c.b16 %v1472, %v1468
  %v1521 = vpack.c.b16 %v1477, %v1473
  %v1522 = vpack.c.b16 %v1478, %v1474
  %v1523 = vpack.c.b16 %v1479, %v1475
  %v1524 = vpack.c.b16 %v1480, %v1476
  %v1525 = vpack.c.b16 %v1485, %v1481
  %v1526 = vpack.c.b16 %v1486, %v1482
  %v1527 = vpack.c.b16 %v1487, %v1483
  %v1528 = vpack.c.b16 %v1488, %v1484
  %v1529 = vpack.c.b16 %v1493, %v1489
  %v1530 = vpack.c.b16 %v1494, %v1490
  %v1531 = vpack.c.b16 %v1495, %v1491
  %v1532 = vpack.c.b16 %v1496, %v1492
  %v1533 = vpack.c.b16 %v1501, %v1497
  %v1534 = vpack.c.b16 %v1502, %v1498
  %v1535 = vpack.c.b16 %v1503, %v1499
  %v1536 = vpack.c.b16 %v1504, %v1500
  %1569 = vmatprep.subr.bf16.mxu0 %v1506
  %1570 = vmatpush1.bf16.msra.mxu0 %v1505
  %1571 = vmatprep.subr.bf16.mxu0 %v1510
  %1572 = vmatpush1.bf16.msra.mxu0 %v1509
  %1573 = vmatprep.subr.bf16.mxu0 %v1514
  %1574 = vmatpush1.bf16.msra.mxu0 %v1513
  %1575 = vmatprep.subr.bf16.mxu0 %v1518
  %1576 = vmatpush1.bf16.msra.mxu0 %v1517
  %1577 = vmatprep.subr.bf16.mxu0 %v1522
  %1578 = vmatpush1.bf16.msra.mxu0 %v1521
  %1579 = vmatprep.subr.bf16.mxu0 %v1526
  %1580 = vmatpush1.bf16.msra.mxu0 %v1525
  %1581 = vmatprep.subr.bf16.mxu0 %v1530
  %1582 = vmatpush1.bf16.msra.mxu0 %v1529
  %1583 = vmatprep.subr.bf16.mxu0 %v1534
  %1584 = vmatpush1.bf16.msra.mxu0 %v1533
  %1585 = vmatprep.subr.bf16.mxu0 0
  %1586 = vmatpush1.bf16.msra.mxu0 0
  %1587 = vmatprep.subr.bf16.mxu0 0
  %1588 = vmatpush1.bf16.msra.mxu0 0
  %1589 = vmatprep.subr.bf16.mxu0 0
  %1590 = vmatpush1.bf16.msra.mxu0 0
  %1591 = vmatprep.subr.bf16.mxu0 0
  %1592 = vmatpush1.bf16.msra.mxu0 0
  %1593 = vmatprep.subr.bf16.mxu0 0
  %1594 = vmatpush1.bf16.msra.mxu0 0
  %1595 = vmatprep.subr.bf16.mxu0 0
  %1596 = vmatpush1.bf16.msra.mxu0 0
  %1597 = vmatprep.subr.bf16.mxu0 0
  %1598 = vmatpush1.bf16.msra.mxu0 0
  %1599 = vmatprep.subr.bf16.mxu0 0
  %1600 = vmatpush1.bf16.msra.mxu0 0
  %1601 = vmatprep.mubr.bf16.mxu0 0
  %1602 = vmatmul.mubr.bf16.gmra.mrb[0].mxu0 %v1354
  %v1603 = vpop.f32.mrb[0].mxu0
  %v1604 = vadd.f32 %v1392, %v1603
  %v1605 = vpop.f32.mrb[0].mxu0
  %v1606 = vadd.f32 %v1396, %v1605
  %v1607 = vpop.f32.mrb[0].mxu0
  %v1608 = vpop.f32.mrb[0].mxu0
  %1609 = vdwg.mxu0
  %1610 = vmatprep.subr.bf16.mxu0 %v1508
  %1611 = vmatpush1.bf16.msra.mxu0 %v1507
  %1612 = vmatprep.subr.bf16.mxu0 %v1512
  %1613 = vmatpush1.bf16.msra.mxu0 %v1511
  %1614 = vmatprep.subr.bf16.mxu0 %v1516
  %1615 = vmatpush1.bf16.msra.mxu0 %v1515
  %1616 = vmatprep.subr.bf16.mxu0 %v1520
  %1617 = vmatpush1.bf16.msra.mxu0 %v1519
  %1618 = vmatprep.subr.bf16.mxu0 %v1524
  %1619 = vmatpush1.bf16.msra.mxu0 %v1523
  %1620 = vmatprep.subr.bf16.mxu0 %v1528
  %1621 = vmatpush1.bf16.msra.mxu0 %v1527
  %1622 = vmatprep.subr.bf16.mxu0 %v1532
  %1623 = vmatpush1.bf16.msra.mxu0 %v1531
  %1624 = vmatprep.subr.bf16.mxu0 %v1536
  %1625 = vmatpush1.bf16.msra.mxu0 %v1535
  %1626 = vmatprep.subr.bf16.mxu0 0
  %1627 = vmatpush1.bf16.msra.mxu0 0
  %1628 = vmatprep.subr.bf16.mxu0 0
  %1629 = vmatpush1.bf16.msra.mxu0 0
  %1630 = vmatprep.subr.bf16.mxu0 0
  %1631 = vmatpush1.bf16.msra.mxu0 0
  %1632 = vmatprep.subr.bf16.mxu0 0
  %1633 = vmatpush1.bf16.msra.mxu0 0
  %1634 = vmatprep.subr.bf16.mxu0 0
  %1635 = vmatpush1.bf16.msra.mxu0 0
  %1636 = vmatprep.subr.bf16.mxu0 0
  %1637 = vmatpush1.bf16.msra.mxu0 0
  %1638 = vmatprep.subr.bf16.mxu0 0
  %1639 = vmatpush1.bf16.msra.mxu0 0
  %1640 = vmatprep.subr.bf16.mxu0 0
  %1641 = vmatpush1.bf16.msra.mxu0 0
  %1642 = vmatprep.mubr.bf16.mxu0 0
  %1643 = vmatmul.mubr.bf16.gmra.mrb[0].mxu0 %v1354
  %v1644 = vpop.f32.mrb[0].mxu0
  %v1645 = vadd.f32 %v1400, %v1644
  %v1646 = vpop.f32.mrb[0].mxu0
  %v1647 = vadd.f32 %v1404, %v1646
  %v1648 = vpop.f32.mrb[0].mxu0
  %v1649 = vpop.f32.mrb[0].mxu0
  %1650 = vdwg.mxu0
  %v1651 = vmul.f32 %v1604, 0.5
  %v1652 = vmul.f32 %v1606, 0.5
  %v1653 = vmul.f32 %v1645, 0.5
  %v1654 = vtanh.pop %v1651
  %v1655 = vtanh.pop %v1652
  %v1656 = vtanh.pop %v1653
  %v1657 = vmul.f32 %v1654, 0.5
  %v1658 = vmul.f32 %v1655, 0.5
  %v1659 = vmul.f32 %v1656, 0.5
  %v1660 = vadd.f32 %v1657, 0.5
  %v1661 = vadd.f32 %v1658, 0.5
  %v1662 = vadd.f32 %v1659, 0.5
  %v1663 = vtanh.pop %v1647
  %v1664 = vmul.f32 %v1661, %v1351
  %v1665 = vmul.f32 %v1660, %v1663
  %v1666 = vadd.f32 %v1664, %v1665
  %v1667 = vtanh.pop %v1666
  %v1668 = vmul.f32 %v1662, %v1667
  %v1669 = vpack.c.bf16 %v1668, %v1668
  %v1670 = vld [vmem:[%s6] sm:$0xff]
  %v1671 = vld [vmem:[%s6 + $0x8] sm:$0xff]
  %v1672 = vld [vmem:[%s6 + $0x10] sm:$0xff]
  %v1673 = vld [vmem:[%s6 + $0x18] sm:$0xff]
  %v1674 = vld [vmem:[%s6 + $0x20] sm:$0xff]
  %v1675 = vld [vmem:[%s6 + $0x28] sm:$0xff]
  %v1676 = vld [vmem:[%s6 + $0x30] sm:$0xff]
  %v1677 = vld [vmem:[%s6 + $0x38] sm:$0xff]
  %v1678 = vld [vmem:[%s6 + $0x40] sm:$0xff]
  %v1679 = vld [vmem:[%s6 + $0x48] sm:$0xff]
  %v1680 = vld [vmem:[%s6 + $0x50] sm:$0xff]
  %v1681 = vld [vmem:[%s6 + $0x58] sm:$0xff]
  %v1682 = vld [vmem:[%s6 + $0x60] sm:$0xff]
  %v1683 = vld [vmem:[%s6 + $0x68] sm:$0xff]
  %v1684 = vld [vmem:[%s6 + $0x70] sm:$0xff]
  %v1685 = vld [vmem:[%s6 + $0x78] sm:$0xff]
  %v1686 = vld [vmem:[%s6 + $0x80] sm:$0xff]
  %v1687 = vld [vmem:[%s6 + $0x88] sm:$0xff]
  %v1688 = vld [vmem:[%s6 + $0x90] sm:$0xff]
  %v1689 = vld [vmem:[%s6 + $0x98] sm:$0xff]
  %v1690 = vld [vmem:[%s6 + $0xa0] sm:$0xff]
  %v1691 = vld [vmem:[%s6 + $0xa8] sm:$0xff]
  %v1692 = vld [vmem:[%s6 + $0xb0] sm:$0xff]
  %v1693 = vld [vmem:[%s6 + $0xb8] sm:$0xff]
  %v1694 = vld [vmem:[%s6 + $0xc0] sm:$0xff]
  %v1695 = vld [vmem:[%s6 + $0xc8] sm:$0xff]
  %v1696 = vld [vmem:[%s6 + $0xd0] sm:$0xff]
  %v1697 = vld [vmem:[%s6 + $0xd8] sm:$0xff]
  %v1698 = vld [vmem:[%s6 + $0xe0] sm:$0xff]
  %v1699 = vld [vmem:[%s6 + $0xe8] sm:$0xff]
  %v1700 = vld [vmem:[%s6 + $0xf0] sm:$0xff]
  %v1701 = vld [vmem:[%s6 + $0xf8] sm:$0xff]
  %v1702 = vld [vmem:[%s7] sm:$0xf]
  %v1704 = vlaneseq
  %v1705 = vshrl.u32 %v1704, 7
  %v1706 = vsub.s32 0, %v1705
  %v1707 = vrot.slane %v1702, %v1706
  %v1708 = vlaneseq
  %v1709 = vshrl.u32 %v1708, 7
  %v1710 = vsub.s32 1, %v1709
  %v1711 = vrot.slane %v1702, %v1710
  %v1712 = vlaneseq
  %v1713 = vshrl.u32 %v1712, 7
  %v1714 = vsub.s32 2, %v1713
  %v1715 = vrot.slane %v1702, %v1714
  %v1716 = vlaneseq
  %v1717 = vshrl.u32 %v1716, 7
  %v1718 = vsub.s32 3, %v1717
  %v1719 = vrot.slane %v1702, %v1718
  %v1756 = vunpack.c.l.b16 %v1670
  %v1757 = vunpack.c.h.b16 %v1670
  %v1758 = vunpack.c.l.b16 %v1671
  %v1759 = vunpack.c.h.b16 %v1671
  %v1760 = vunpack.c.l.b16 %v1672
  %v1761 = vunpack.c.h.b16 %v1672
  %v1762 = vunpack.c.l.b16 %v1673
  %v1763 = vunpack.c.h.b16 %v1673
  %v1764 = vunpack.c.l.b16 %v1674
  %v1765 = vunpack.c.h.b16 %v1674
  %v1766 = vunpack.c.l.b16 %v1675
  %v1767 = vunpack.c.h.b16 %v1675
  %v1768 = vunpack.c.l.b16 %v1676
  %v1769 = vunpack.c.h.b16 %v1676
  %v1770 = vunpack.c.l.b16 %v1677
  %v1771 = vunpack.c.h.b16 %v1677
  %v1772 = vunpack.c.l.b16 %v1678
  %v1773 = vunpack.c.h.b16 %v1678
  %v1774 = vunpack.c.l.b16 %v1679
  %v1775 = vunpack.c.h.b16 %v1679
  %v1776 = vunpack.c.l.b16 %v1680
  %v1777 = vunpack.c.h.b16 %v1680
  %v1778 = vunpack.c.l.b16 %v1681
  %v1779 = vunpack.c.h.b16 %v1681
  %v1780 = vunpack.c.l.b16 %v1682
  %v1781 = vunpack.c.h.b16 %v1682
  %v1782 = vunpack.c.l.b16 %v1683
  %v1783 = vunpack.c.h.b16 %v1683
  %v1784 = vunpack.c.l.b16 %v1684
  %v1785 = vunpack.c.h.b16 %v1684
  %v1786 = vunpack.c.l.b16 %v1685
  %v1787 = vunpack.c.h.b16 %v1685
  %v1788 = vunpack.c.l.b16 %v1686
  %v1789 = vunpack.c.h.b16 %v1686
  %v1790 = vunpack.c.l.b16 %v1687
  %v1791 = vunpack.c.h.b16 %v1687
  %v1792 = vunpack.c.l.b16 %v1688
  %v1793 = vunpack.c.h.b16 %v1688
  %v1794 = vunpack.c.l.b16 %v1689
  %v1795 = vunpack.c.h.b16 %v1689
  %v1796 = vunpack.c.l.b16 %v1690
  %v1797 = vunpack.c.h.b16 %v1690
  %v1798 = vunpack.c.l.b16 %v1691
  %v1799 = vunpack.c.h.b16 %v1691
  %v1800 = vunpack.c.l.b16 %v1692
  %v1801 = vunpack.c.h.b16 %v1692
  %v1802 = vunpack.c.l.b16 %v1693
  %v1803 = vunpack.c.h.b16 %v1693
  %v1804 = vunpack.c.l.b16 %v1694
  %v1805 = vunpack.c.h.b16 %v1694
  %v1806 = vunpack.c.l.b16 %v1695
  %v1807 = vunpack.c.h.b16 %v1695
  %v1808 = vunpack.c.l.b16 %v1696
  %v1809 = vunpack.c.h.b16 %v1696
  %v1810 = vunpack.c.l.b16 %v1697
  %v1811 = vunpack.c.h.b16 %v1697
  %v1812 = vunpack.c.l.b16 %v1698
  %v1813 = vunpack.c.h.b16 %v1698
  %v1814 = vunpack.c.l.b16 %v1699
  %v1815 = vunpack.c.h.b16 %v1699
  %v1816 = vunpack.c.l.b16 %v1700
  %v1817 = vunpack.c.h.b16 %v1700
  %v1818 = vunpack.c.l.b16 %v1701
  %v1819 = vunpack.c.h.b16 %v1701
  %v1820 = vpack.c.b16 %v1760, %v1756
  %v1821 = vpack.c.b16 %v1761, %v1757
  %v1822 = vpack.c.b16 %v1762, %v1758
  %v1823 = vpack.c.b16 %v1763, %v1759
  %v1824 = vpack.c.b16 %v1768, %v1764
  %v1825 = vpack.c.b16 %v1769, %v1765
  %v1826 = vpack.c.b16 %v1770, %v1766
  %v1827 = vpack.c.b16 %v1771, %v1767
  %v1828 = vpack.c.b16 %v1776, %v1772
  %v1829 = vpack.c.b16 %v1777, %v1773
  %v1830 = vpack.c.b16 %v1778, %v1774
  %v1831 = vpack.c.b16 %v1779, %v1775
  %v1832 = vpack.c.b16 %v1784, %v1780
  %v1833 = vpack.c.b16 %v1785, %v1781
  %v1834 = vpack.c.b16 %v1786, %v1782
  %v1835 = vpack.c.b16 %v1787, %v1783
  %v1836 = vpack.c.b16 %v1792, %v1788
  %v1837 = vpack.c.b16 %v1793, %v1789
  %v1838 = vpack.c.b16 %v1794, %v1790
  %v1839 = vpack.c.b16 %v1795, %v1791
  %v1840 = vpack.c.b16 %v1800, %v1796
  %v1841 = vpack.c.b16 %v1801, %v1797
  %v1842 = vpack.c.b16 %v1802, %v1798
  %v1843 = vpack.c.b16 %v1803, %v1799
  %v1844 = vpack.c.b16 %v1808, %v1804
  %v1845 = vpack.c.b16 %v1809, %v1805
  %v1846 = vpack.c.b16 %v1810, %v1806
  %v1847 = vpack.c.b16 %v1811, %v1807
  %v1848 = vpack.c.b16 %v1816, %v1812
  %v1849 = vpack.c.b16 %v1817, %v1813
  %v1850 = vpack.c.b16 %v1818, %v1814
  %v1851 = vpack.c.b16 %v1819, %v1815
  %1884 = vmatprep.subr.bf16.mxu0 %v1821
  %1885 = vmatpush1.bf16.msra.mxu0 %v1820
  %1886 = vmatprep.subr.bf16.mxu0 %v1825
  %1887 = vmatpush1.bf16.msra.mxu0 %v1824
  %1888 = vmatprep.subr.bf16.mxu0 %v1829
  %1889 = vmatpush1.bf16.msra.mxu0 %v1828
  %1890 = vmatprep.subr.bf16.mxu0 %v1833
  %1891 = vmatpush1.bf16.msra.mxu0 %v1832
  %1892 = vmatprep.subr.bf16.mxu0 %v1837
  %1893 = vmatpush1.bf16.msra.mxu0 %v1836
  %1894 = vmatprep.subr.bf16.mxu0 %v1841
  %1895 = vmatpush1.bf16.msra.mxu0 %v1840
  %1896 = vmatprep.subr.bf16.mxu0 %v1845
  %1897 = vmatpush1.bf16.msra.mxu0 %v1844
  %1898 = vmatprep.subr.bf16.mxu0 %v1849
  %1899 = vmatpush1.bf16.msra.mxu0 %v1848
  %1900 = vmatprep.subr.bf16.mxu0 0
  %1901 = vmatpush1.bf16.msra.mxu0 0
  %1902 = vmatprep.subr.bf16.mxu0 0
  %1903 = vmatpush1.bf16.msra.mxu0 0
  %1904 = vmatprep.subr.bf16.mxu0 0
  %1905 = vmatpush1.bf16.msra.mxu0 0
  %1906 = vmatprep.subr.bf16.mxu0 0
  %1907 = vmatpush1.bf16.msra.mxu0 0
  %1908 = vmatprep.subr.bf16.mxu0 0
  %1909 = vmatpush1.bf16.msra.mxu0 0
  %1910 = vmatprep.subr.bf16.mxu0 0
  %1911 = vmatpush1.bf16.msra.mxu0 0
  %1912 = vmatprep.subr.bf16.mxu0 0
  %1913 = vmatpush1.bf16.msra.mxu0 0
  %1914 = vmatprep.subr.bf16.mxu0 0
  %1915 = vmatpush1.bf16.msra.mxu0 0
  %1916 = vmatprep.mubr.bf16.mxu0 0
  %1917 = vmatmul.mubr.bf16.gmra.mrb[0].mxu0 %v1669
  %v1918 = vpop.f32.mrb[0].mxu0
  %v1919 = vadd.f32 %v1707, %v1918
  %v1920 = vpop.f32.mrb[0].mxu0
  %v1921 = vadd.f32 %v1711, %v1920
  %v1922 = vpop.f32.mrb[0].mxu0
  %v1923 = vpop.f32.mrb[0].mxu0
  %1924 = vdwg.mxu0
  %1925 = vmatprep.subr.bf16.mxu0 %v1823
  %1926 = vmatpush1.bf16.msra.mxu0 %v1822
  %1927 = vmatprep.subr.bf16.mxu0 %v1827
  %1928 = vmatpush1.bf16.msra.mxu0 %v1826
  %1929 = vmatprep.subr.bf16.mxu0 %v1831
  %1930 = vmatpush1.bf16.msra.mxu0 %v1830
  %1931 = vmatprep.subr.bf16.mxu0 %v1835
  %1932 = vmatpush1.bf16.msra.mxu0 %v1834
  %1933 = vmatprep.subr.bf16.mxu0 %v1839
  %1934 = vmatpush1.bf16.msra.mxu0 %v1838
  %1935 = vmatprep.subr.bf16.mxu0 %v1843
  %1936 = vmatpush1.bf16.msra.mxu0 %v1842
  %1937 = vmatprep.subr.bf16.mxu0 %v1847
  %1938 = vmatpush1.bf16.msra.mxu0 %v1846
  %1939 = vmatprep.subr.bf16.mxu0 %v1851
  %1940 = vmatpush1.bf16.msra.mxu0 %v1850
  %1941 = vmatprep.subr.bf16.mxu0 0
  %1942 = vmatpush1.bf16.msra.mxu0 0
  %1943 = vmatprep.subr.bf16.mxu0 0
  %1944 = vmatpush1.bf16.msra.mxu0 0
  %1945 = vmatprep.subr.bf16.mxu0 0
  %1946 = vmatpush1.bf16.msra.mxu0 0
  %1947 = vmatprep.subr.bf16.mxu0 0
  %1948 = vmatpush1.bf16.msra.mxu0 0
  %1949 = vmatprep.subr.bf16.mxu0 0
  %1950 = vmatpush1.bf16.msra.mxu0 0
  %1951 = vmatprep.subr.bf16.mxu0 0
  %1952 = vmatpush1.bf16.msra.mxu0 0
  %1953 = vmatprep.subr.bf16.mxu0 0
  %1954 = vmatpush1.bf16.msra.mxu0 0
  %1955 = vmatprep.subr.bf16.mxu0 0
  %1956 = vmatpush1.bf16.msra.mxu0 0
  %1957 = vmatprep.mubr.bf16.mxu0 0
  %1958 = vmatmul.mubr.bf16.gmra.mrb[0].mxu0 %v1669
  %v1959 = vpop.f32.mrb[0].mxu0
  %v1960 = vadd.f32 %v1715, %v1959
  %v1961 = vpop.f32.mrb[0].mxu0
  %v1962 = vadd.f32 %v1719, %v1961
  %v1963 = vpop.f32.mrb[0].mxu0
  %v1964 = vpop.f32.mrb[0].mxu0
  %1965 = vdwg.mxu0
  %v1966 = vmul.f32 %v1919, 0.5
  %v1967 = vmul.f32 %v1921, 0.5
  %v1968 = vmul.f32 %v1960, 0.5
  %v1969 = vtanh.pop %v1966
  %v1970 = vtanh.pop %v1967
  %v1971 = vtanh.pop %v1968
  %v1972 = vmul.f32 %v1969, 0.5
  %v1973 = vmul.f32 %v1970, 0.5
  %v1974 = vmul.f32 %v1971, 0.5
  %v1975 = vadd.f32 %v1972, 0.5
  %v1976 = vadd.f32 %v1973, 0.5
  %v1977 = vadd.f32 %v1974, 0.5
  %v1978 = vtanh.pop %v1962
  %v1979 = vmul.f32 %v1976, %v1666
  %v1980 = vmul.f32 %v1975, %v1978
  %v1981 = vadd.f32 %v1979, %v1980
  %v1982 = vtanh.pop %v1981
  %v1983 = vmul.f32 %v1977, %v1982
  %v1984 = vpack.c.bf16 %v1983, %v1983
  %1985 = vmatprep.subr.bf16.mxu0 %v1821
  %1986 = vmatpush1.bf16.msra.mxu0 %v1820
  %1987 = vmatprep.subr.bf16.mxu0 %v1825
  %1988 = vmatpush1.bf16.msra.mxu0 %v1824
  %1989 = vmatprep.subr.bf16.mxu0 %v1829
  %1990 = vmatpush1.bf16.msra.mxu0 %v1828
  %1991 = vmatprep.subr.bf16.mxu0 %v1833
  %1992 = vmatpush1.bf16.msra.mxu0 %v1832
  %1993 = vmatprep.subr.bf16.mxu0 %v1837
  %1994 = vmatpush1.bf16.msra.mxu0 %v1836
  %1995 = vmatprep.subr.bf16.mxu0 %v1841
  %1996 = vmatpush1.bf16.msra.mxu0 %v1840
  %1997 = vmatprep.subr.bf16.mxu0 %v1845
  %1998 = vmatpush1.bf16.msra.mxu0 %v1844
  %1999 = vmatprep.subr.bf16.mxu0 %v1849
  %2000 = vmatpush1.bf16.msra.mxu0 %v1848
  %2001 = vmatprep.subr.bf16.mxu0 0
  %2002 = vmatpush1.bf16.msra.mxu0 0
  %2003 = vmatprep.subr.bf16.mxu0 0
  %2004 = vmatpush1.bf16.msra.mxu0 0
  %2005 = vmatprep.subr.bf16.mxu0 0
  %2006 = vmatpush1.bf16.msra.mxu0 0
  %2007 = vmatprep.subr.bf16.mxu0 0
  %2008 = vmatpush1.bf16.msra.mxu0 0
  %2009 = vmatprep.subr.bf16.mxu0 0
  %2010 = vmatpush1.bf16.msra.mxu0 0
  %2011 = vmatprep.subr.bf16.mxu0 0
  %2012 = vmatpush1.bf16.msra.mxu0 0
  %2013 = vmatprep.subr.bf16.mxu0 0
  %2014 = vmatpush1.bf16.msra.mxu0 0
  %2015 = vmatprep.subr.bf16.mxu0 0
  %2016 = vmatpush1.bf16.msra.mxu0 0
  %2017 = vmatprep.mubr.bf16.mxu0 0
  %2018 = vmatmul.mubr.bf16.gmra.mrb[0].mxu0 %v1984
  %v2019 = vpop.f32.mrb[0].mxu0
  %v2020 = vadd.f32 %v1707, %v2019
  %v2021 = vpop.f32.mrb[0].mxu0
  %v2022 = vadd.f32 %v1711, %v2021
  %v2023 = vpop.f32.mrb[0].mxu0
  %v2024 = vpop.f32.mrb[0].mxu0
  %2025 = vdwg.mxu0
  %2026 = vmatprep.subr.bf16.mxu0 %v1823
  %2027 = vmatpush1.bf16.msra.mxu0 %v1822
  %2028 = vmatprep.subr.bf16.mxu0 %v1827
  %2029 = vmatpush1.bf16.msra.mxu0 %v1826
  %2030 = vmatprep.subr.bf16.mxu0 %v1831
  %2031 = vmatpush1.bf16.msra.mxu0 %v1830
  %2032 = vmatprep.subr.bf16.mxu0 %v1835
  %2033 = vmatpush1.bf16.msra.mxu0 %v1834
  %2034 = vmatprep.subr.bf16.mxu0 %v1839
  %2035 = vmatpush1.bf16.msra.mxu0 %v1838
  %2036 = vmatprep.subr.bf16.mxu0 %v1843
  %2037 = vmatpush1.bf16.msra.mxu0 %v1842
  %2038 = vmatprep.subr.bf16.mxu0 %v1847
  %2039 = vmatpush1.bf16.msra.mxu0 %v1846
  %2040 = vmatprep.subr.bf16.mxu0 %v1851
  %2041 = vmatpush1.bf16.msra.mxu0 %v1850
  %2042 = vmatprep.subr.bf16.mxu0 0
  %2043 = vmatpush1.bf16.msra.mxu0 0
  %2044 = vmatprep.subr.bf16.mxu0 0
  %2045 = vmatpush1.bf16.msra.mxu0 0
  %2046 = vmatprep.subr.bf16.mxu0 0
  %2047 = vmatpush1.bf16.msra.mxu0 0
  %2048 = vmatprep.subr.bf16.mxu0 0
  %2049 = vmatpush1.bf16.msra.mxu0 0
  %2050 = vmatprep.subr.bf16.mxu0 0
  %2051 = vmatpush1.bf16.msra.mxu0 0
  %2052 = vmatprep.subr.bf16.mxu0 0
  %2053 = vmatpush1.bf16.msra.mxu0 0
  %2054 = vmatprep.subr.bf16.mxu0 0
  %2055 = vmatpush1.bf16.msra.mxu0 0
  %2056 = vmatprep.subr.bf16.mxu0 0
  %2057 = vmatpush1.bf16.msra.mxu0 0
  %2058 = vmatprep.mubr.bf16.mxu0 0
  %2059 = vmatmul.mubr.bf16.gmra.mrb[0].mxu0 %v1984
  %v2060 = vpop.f32.mrb[0].mxu0
  %v2061 = vadd.f32 %v1715, %v2060
  %v2062 = vpop.f32.mrb[0].mxu0
  %v2063 = vadd.f32 %v1719, %v2062
  %v2064 = vpop.f32.mrb[0].mxu0
  %v2065 = vpop.f32.mrb[0].mxu0
  %2066 = vdwg.mxu0
  %v2067 = vmul.f32 %v2020, 0.5
  %v2068 = vmul.f32 %v2022, 0.5
  %v2069 = vmul.f32 %v2061, 0.5
  %v2070 = vtanh.pop %v2067
  %v2071 = vtanh.pop %v2068
  %v2072 = vtanh.pop %v2069
  %v2073 = vmul.f32 %v2070, 0.5
  %v2074 = vmul.f32 %v2071, 0.5
  %v2075 = vmul.f32 %v2072, 0.5
  %v2076 = vadd.f32 %v2073, 0.5
  %v2077 = vadd.f32 %v2074, 0.5
  %v2078 = vadd.f32 %v2075, 0.5
  %v2079 = vtanh.pop %v2063
  %v2080 = vmul.f32 %v2077, %v1981
  %v2081 = vmul.f32 %v2076, %v2079
  %v2082 = vadd.f32 %v2080, %v2081
  %v2083 = vtanh.pop %v2082
  %v2084 = vmul.f32 %v2078, %v2083
  %v2085 = vpack.c.bf16 %v2084, %v2084
  %2086 = vmatprep.subr.bf16.mxu0 %v1821
  %2087 = vmatpush1.bf16.msra.mxu0 %v1820
  %2088 = vmatprep.subr.bf16.mxu0 %v1825
  %2089 = vmatpush1.bf16.msra.mxu0 %v1824
  %2090 = vmatprep.subr.bf16.mxu0 %v1829
  %2091 = vmatpush1.bf16.msra.mxu0 %v1828
  %2092 = vmatprep.subr.bf16.mxu0 %v1833
  %2093 = vmatpush1.bf16.msra.mxu0 %v1832
  %2094 = vmatprep.subr.bf16.mxu0 %v1837
  %2095 = vmatpush1.bf16.msra.mxu0 %v1836
  %2096 = vmatprep.subr.bf16.mxu0 %v1841
  %2097 = vmatpush1.bf16.msra.mxu0 %v1840
  %2098 = vmatprep.subr.bf16.mxu0 %v1845
  %2099 = vmatpush1.bf16.msra.mxu0 %v1844
  %2100 = vmatprep.subr.bf16.mxu0 %v1849
  %2101 = vmatpush1.bf16.msra.mxu0 %v1848
  %2102 = vmatprep.subr.bf16.mxu0 0
  %2103 = vmatpush1.bf16.msra.mxu0 0
  %2104 = vmatprep.subr.bf16.mxu0 0
  %2105 = vmatpush1.bf16.msra.mxu0 0
  %2106 = vmatprep.subr.bf16.mxu0 0
  %2107 = vmatpush1.bf16.msra.mxu0 0
  %2108 = vmatprep.subr.bf16.mxu0 0
  %2109 = vmatpush1.bf16.msra.mxu0 0
  %2110 = vmatprep.subr.bf16.mxu0 0
  %2111 = vmatpush1.bf16.msra.mxu0 0
  %2112 = vmatprep.subr.bf16.mxu0 0
  %2113 = vmatpush1.bf16.msra.mxu0 0
  %2114 = vmatprep.subr.bf16.mxu0 0
  %2115 = vmatpush1.bf16.msra.mxu0 0
  %2116 = vmatprep.subr.bf16.mxu0 0
  %2117 = vmatpush1.bf16.msra.mxu0 0
  %2118 = vmatprep.mubr.bf16.mxu0 0
  %2119 = vmatmul.mubr.bf16.gmra.mrb[0].mxu0 %v2085
  %v2120 = vpop.f32.mrb[0].mxu0
  %v2121 = vadd.f32 %v1707, %v2120
  %v2122 = vpop.f32.mrb[0].mxu0
  %v2123 = vadd.f32 %v1711, %v2122
  %v2124 = vpop.f32.mrb[0].mxu0
  %v2125 = vpop.f32.mrb[0].mxu0
  %2126 = vdwg.mxu0
  %2127 = vmatprep.subr.bf16.mxu0 %v1823
  %2128 = vmatpush1.bf16.msra.mxu0 %v1822
  %2129 = vmatprep.subr.bf16.mxu0 %v1827
  %2130 = vmatpush1.bf16.msra.mxu0 %v1826
  %2131 = vmatprep.subr.bf16.mxu0 %v1831
  %2132 = vmatpush1.bf16.msra.mxu0 %v1830
  %2133 = vmatprep.subr.bf16.mxu0 %v1835
  %2134 = vmatpush1.bf16.msra.mxu0 %v1834
  %2135 = vmatprep.subr.bf16.mxu0 %v1839
  %2136 = vmatpush1.bf16.msra.mxu0 %v1838
  %2137 = vmatprep.subr.bf16.mxu0 %v1843
  %2138 = vmatpush1.bf16.msra.mxu0 %v1842
  %2139 = vmatprep.subr.bf16.mxu0 %v1847
  %2140 = vmatpush1.bf16.msra.mxu0 %v1846
  %2141 = vmatprep.subr.bf16.mxu0 %v1851
  %2142 = vmatpush1.bf16.msra.mxu0 %v1850
  %2143 = vmatprep.subr.bf16.mxu0 0
  %2144 = vmatpush1.bf16.msra.mxu0 0
  %2145 = vmatprep.subr.bf16.mxu0 0
  %2146 = vmatpush1.bf16.msra.mxu0 0
  %2147 = vmatprep.subr.bf16.mxu0 0
  %2148 = vmatpush1.bf16.msra.mxu0 0
  %2149 = vmatprep.subr.bf16.mxu0 0
  %2150 = vmatpush1.bf16.msra.mxu0 0
  %2151 = vmatprep.subr.bf16.mxu0 0
  %2152 = vmatpush1.bf16.msra.mxu0 0
  %2153 = vmatprep.subr.bf16.mxu0 0
  %2154 = vmatpush1.bf16.msra.mxu0 0
  %2155 = vmatprep.subr.bf16.mxu0 0
  %2156 = vmatpush1.bf16.msra.mxu0 0
  %2157 = vmatprep.subr.bf16.mxu0 0
  %2158 = vmatpush1.bf16.msra.mxu0 0
  %2159 = vmatprep.mubr.bf16.mxu0 0
  %2160 = vmatmul.mubr.bf16.gmra.mrb[0].mxu0 %v2085
  %v2161 = vpop.f32.mrb[0].mxu0
  %v2162 = vadd.f32 %v1715, %v2161
  %v2163 = vpop.f32.mrb[0].mxu0
  %v2164 = vadd.f32 %v1719, %v2163
  %v2165 = vpop.f32.mrb[0].mxu0
  %v2166 = vpop.f32.mrb[0].mxu0
  %2167 = vdwg.mxu0
  %v2168 = vmul.f32 %v2121, 0.5
  %v2169 = vmul.f32 %v2123, 0.5
  %v2170 = vmul.f32 %v2162, 0.5
  %v2171 = vtanh.pop %v2168
  %v2172 = vtanh.pop %v2169
  %v2173 = vtanh.pop %v2170
  %v2174 = vmul.f32 %v2171, 0.5
  %v2175 = vmul.f32 %v2172, 0.5
  %v2176 = vmul.f32 %v2173, 0.5
  %v2177 = vadd.f32 %v2174, 0.5
  %v2178 = vadd.f32 %v2175, 0.5
  %v2179 = vadd.f32 %v2176, 0.5
  %v2180 = vtanh.pop %v2164
  %v2181 = vmul.f32 %v2178, %v2082
  %v2182 = vmul.f32 %v2177, %v2180
  %v2183 = vadd.f32 %v2181, %v2182
  %v2184 = vtanh.pop %v2183
  %v2185 = vmul.f32 %v2179, %v2184
  %v2186 = vld [vmem:[%s8] sm:$0xff]
  %v2187 = vld [vmem:[%s8 + $0x8] sm:$0xff]
  %v2188 = vld [vmem:[%s8 + $0x10] sm:$0xff]
  %v2189 = vld [vmem:[%s8 + $0x18] sm:$0xff]
  %v2190 = vld [vmem:[%s8 + $0x20] sm:$0xff]
  %v2191 = vld [vmem:[%s8 + $0x28] sm:$0xff]
  %v2192 = vld [vmem:[%s8 + $0x30] sm:$0xff]
  %v2193 = vld [vmem:[%s8 + $0x38] sm:$0xff]
  %v2194 = vld [vmem:[%s8 + $0x40] sm:$0xff]
  %v2195 = vld [vmem:[%s8 + $0x48] sm:$0xff]
  %v2196 = vld [vmem:[%s8 + $0x50] sm:$0xff]
  %v2197 = vld [vmem:[%s8 + $0x58] sm:$0xff]
  %v2198 = vld [vmem:[%s8 + $0x60] sm:$0xff]
  %v2199 = vld [vmem:[%s8 + $0x68] sm:$0xff]
  %v2200 = vld [vmem:[%s8 + $0x70] sm:$0xff]
  %v2201 = vld [vmem:[%s8 + $0x78] sm:$0xff]
  %v2202 = vld [vmem:[#allocation2] sm:$0x1]
  %v2204 = vlaneseq
  %v2205 = vshrl.u32 %v2204, 7
  %v2206 = vsub.s32 0, %v2205
  %v2207 = vrot.slane %v2202, %v2206
  %2209 = vmatprep.subr.mxu0 0.0
  %2210 = vmatpush1.msra.mxu0 %v2186
  %2211 = vmatprep.subr.mxu0 0.0
  %2212 = vmatpush1.msra.mxu0 %v2187
  %2213 = vmatprep.subr.mxu0 0.0
  %2214 = vmatpush1.msra.mxu0 %v2188
  %2215 = vmatprep.subr.mxu0 0.0
  %2216 = vmatpush1.msra.mxu0 %v2189
  %2217 = vmatprep.subr.mxu0 0.0
  %2218 = vmatpush1.msra.mxu0 %v2190
  %2219 = vmatprep.subr.mxu0 0.0
  %2220 = vmatpush1.msra.mxu0 %v2191
  %2221 = vmatprep.subr.mxu0 0.0
  %2222 = vmatpush1.msra.mxu0 %v2192
  %2223 = vmatprep.subr.mxu0 0.0
  %2224 = vmatpush1.msra.mxu0 %v2193
  %2225 = vmatprep.subr.mxu0 0.0
  %2226 = vmatpush1.msra.mxu0 %v2194
  %2227 = vmatprep.subr.mxu0 0.0
  %2228 = vmatpush1.msra.mxu0 %v2195
  %2229 = vmatprep.subr.mxu0 0.0
  %2230 = vmatpush1.msra.mxu0 %v2196
  %2231 = vmatprep.subr.mxu0 0.0
  %2232 = vmatpush1.msra.mxu0 %v2197
  %2233 = vmatprep.subr.mxu0 0.0
  %2234 = vmatpush1.msra.mxu0 %v2198
  %2235 = vmatprep.subr.mxu0 0.0
  %2236 = vmatpush1.msra.mxu0 %v2199
  %2237 = vmatprep.subr.mxu0 0.0
  %2238 = vmatpush1.msra.mxu0 %v2200
  %2239 = vmatprep.subr.mxu0 0.0
  %2240 = vmatpush1.msra.mxu0 %v2201
  %2241 = vmatprep.subr.mxu0 0.0
  %2242 = vmatpush1.msra.mxu0 0.0
  %2243 = vmatprep.subr.mxu0 0.0
  %2244 = vmatpush1.msra.mxu0 0.0
  %2245 = vmatprep.subr.mxu0 0.0
  %2246 = vmatpush1.msra.mxu0 0.0
  %2247 = vmatprep.subr.mxu0 0.0
  %2248 = vmatpush1.msra.mxu0 0.0
  %2249 = vmatprep.subr.mxu0 0.0
  %2250 = vmatpush1.msra.mxu0 0.0
  %2251 = vmatprep.subr.mxu0 0.0
  %2252 = vmatpush1.msra.mxu0 0.0
  %2253 = vmatprep.subr.mxu0 0.0
  %2254 = vmatpush1.msra.mxu0 0.0
  %2255 = vmatprep.subr.mxu0 0.0
  %2256 = vmatpush1.msra.mxu0 0.0
  %2257 = vmatprep.subr.mxu0 0.0
  %2258 = vmatpush1.msra.mxu0 0.0
  %2259 = vmatprep.subr.mxu0 0.0
  %2260 = vmatpush1.msra.mxu0 0.0
  %2261 = vmatprep.subr.mxu0 0.0
  %2262 = vmatpush1.msra.mxu0 0.0
  %2263 = vmatprep.subr.mxu0 0.0
  %2264 = vmatpush1.msra.mxu0 0.0
  %2265 = vmatprep.subr.mxu0 0.0
  %2266 = vmatpush1.msra.mxu0 0.0
  %2267 = vmatprep.subr.mxu0 0.0
  %2268 = vmatpush1.msra.mxu0 0.0
  %2269 = vmatprep.subr.mxu0 0.0
  %2270 = vmatpush1.msra.mxu0 0.0
  %2271 = vmatprep.subr.mxu0 0.0
  %2272 = vmatpush1.msra.mxu0 0.0
  %2273 = vmatprep.mubr.f32.mxu0 0.0
  %2274 = vmatmul.mubr.f32.gmra.mrb[0].mxu0 %v1668
  %v2275 = vpop.f32.mrb[0].mxu0
  %v2276 = vadd.f32 %v2207, %v2275
  %v2277 = vpop.f32.mrb[0].mxu0
  %2278 = vmatprep.mubr.f32.mxu0 0.0
  %2279 = vmatmul.mubr.f32.gmra.mrb[0].mxu0 %v1983
  %v2280 = vpop.f32.mrb[0].mxu0
  %v2281 = vadd.f32 %v2207, %v2280
  %v2282 = vpop.f32.mrb[0].mxu0
  %2283 = vmatprep.mubr.f32.mxu0 0.0
  %2284 = vmatmul.mubr.f32.gmra.mrb[0].mxu0 %v2084
  %v2285 = vpop.f32.mrb[0].mxu0
  %v2286 = vadd.f32 %v2207, %v2285
  %v2287 = vpop.f32.mrb[0].mxu0
  %2288 = vmatprep.mubr.f32.mxu0 0.0
  %2289 = vmatmul.mubr.f32.gmra.mrb[0].mxu0 %v2185
  %v2290 = vpop.f32.mrb[0].mxu0
  %v2291 = vadd.f32 %v2207, %v2290
  %v2292 = vpop.f32.mrb[0].mxu0
  %2293 = vdwg.mxu0
  %vm2294 = vcmask 7168
  %2295 = vst.msk [vmem:[%s10] sm:$0xff] %vm2294, %v2276
  %2296 = vst.msk [vmem:[%s10 + $0x8] sm:$0xff] %vm2294, %v2281
  %2297 = vst.msk [vmem:[%s10 + $0x10] sm:$0xff] %vm2294, %v2286
  %2298 = vst.msk [vmem:[%s10 + $0x18] sm:$0xff] %vm2294, %v2291
  // Predicated region
  $region42: #{encoder_decoder_forward.1} parent=0 // pred_check
    _
  $region43: #{encoder_decoder_forward.1} parent=0 // pred_check_branch
    %2300 = sbr.rel (0) target = $region45
  $region44: #{encoder_decoder_forward.1} parent=0 // pred_region
    _
  $region45: #{encoder_decoder_forward.1} parent=0 // pred_fallthru
    _
  // Predicated region
  $region46: #{encoder_decoder_forward.1} parent=0 // pred_check
    _
  $region47: #{encoder_decoder_forward.1} parent=0 // pred_check_branch
    %2302 = sbr.rel (0) target = $region49
  $region48: #{encoder_decoder_forward.1} parent=0 // pred_region
    _
  $region49: #{encoder_decoder_forward.1} parent=0 // pred_fallthru
    _

</llo_original>
